<compile_context>
chip_gen: v7x
topology: tpu7x:2x2x1
jax: 0.10.0
libtpu: 0.0.40
codegen_flags: <defaults>
</compile_context>

<pallas_src>
import functools

import jax
import jax.numpy as jnp
from jax.experimental import pallas as pl
from jax.experimental.pallas import tpu as pltpu

EMBEDDING_SIZE = 10


def _round_up(v, m):
    return (v + m - 1) // m * m


def _device_kind():
    try:
        return jax.devices()[0].device_kind.lower()
    except Exception:
        return ""


def _is_v7():
    kind = _device_kind()
    return any(tag in kind for tag in ("v7", "tpu7", "7x"))


def _num_core_splits():
    # v7x exposes 2 TensorCores per chip: split the node stream across them and
    # combine per-core partial pooled sums afterwards.  v5e/v6e have 1 TC.
    return 2 if _is_v7() else 1


def _vmem_cap_bytes():
    """Generation-gated scoped-VMEM budget: ~75% of physical, <=96 MiB."""
    phys = None
    try:
        phys = int(pltpu.get_tpu_info().vmem_capacity_bytes)
    except Exception:
        phys = None
    if not phys:
        phys = (64 << 20) if _is_v7() else (128 << 20)
    cap = min(96 << 20, phys * 3 // 4)
    if _is_v7():
        cap = min(cap, 48 << 20)   # stay well inside v7x's 64 MiB physical VMEM
    return int(cap)


def _vmem_bytes_per_tile(tile_n, in_channels, hidden, num_graphs):
    """Lane/sublane-padding-aware VMEM footprint estimate for one node tile."""
    f32 = 4
    lane = lambda n: _round_up(max(n, 1), 128)
    sub = lambda n: _round_up(max(n, 1), 8)
    # Double-buffered streamed blocks.  The minor dim of every VMEM buffer pads
    # to 128 lanes: an f32 [tile_n, 4] x-block really occupies tile_n*512 B.
    x_blk = tile_n * lane(in_channels) * f32
    batch_blk = sub(1) * lane(tile_n) * f32            # lane-major int32 [1, tile_n]
    stream = 2 * (x_blk + batch_blk)
    # In-flight activations: conv outputs (f32), bf16 casts, one-hot.  With
    # hidden <= 128 each [tile_n, hidden] slab occupies tile_n*128*4 B.
    temps = 6 * tile_n * lane(hidden) * f32 + sub(num_graphs) * lane(tile_n) * f32
    # Resident weights / biases / pooled accumulator / output (tiny).
    weights = (sub(in_channels) * lane(hidden) * f32
               + 2 * sub(hidden) * lane(hidden) * 2
               + sub(hidden) * lane(EMBEDDING_SIZE) * 2
               + 4 * sub(1) * lane(hidden) * f32)
    resident = (sub(num_graphs) * lane(hidden) * f32
                + sub(num_graphs) * lane(EMBEDDING_SIZE) * f32)
    return stream + temps + weights + resident


def _pick_tile_n(requested, n_nodes, in_channels, hidden, num_graphs, cap_bytes):
    """Largest 128-multiple tile whose (2x safety-factored) estimate fits."""
    upper = _round_up(max(n_nodes, 1), 128)
    tile = min(_round_up(max(requested, 128), 128), upper)
    while tile > 128 and 2 * _vmem_bytes_per_tile(
            tile, in_channels, hidden, num_graphs) > cap_bytes:
        tile -= 128
    return tile


def mlpnet_kernel(x_ref, batch_ref,
                  w1_ref, b1_ref, w2_ref, b2_ref, w3_ref, b3_ref,
                  wf_ref, bf_ref,
                  out_ref, acc_ref, *, finalize_in_kernel):
    step = pl.program_id(1)                        # node-tile axis ("arbitrary")
    num_graphs, hidden = acc_ref.shape

    @pl.when(step == 0)
    def _init():
        acc_ref[...] = jnp.zeros_like(acc_ref)

    x = x_ref[...]                                 # [TILE_N, C] f32
    tile_n, in_channels = x.shape

    # ---- conv1: Linear + tanh -----------------------------------------------
    if in_channels <= 8:
        # Tiny contraction (K=4): unrolled broadcast FMAs on the VPU instead of
        # a nearly empty MXU pass.
        w1 = w1_ref[...]
        h = jnp.broadcast_to(b1_ref[...], (tile_n, hidden)).astype(jnp.float32)
        for k in range(in_channels):
            h = h + x[:, k:k + 1] * w1[k:k + 1, :]
        h = jnp.tanh(h)
    else:
        h = jnp.tanh(jnp.dot(x, w1_ref[...],
                             preferred_element_type=jnp.float32) + b1_ref[...])

    # ---- conv2 / conv3: bf16 MXU matmuls, f32 accumulate + bias + tanh -------
    # (M = tile_n is the only MXU dimension we control; keep it large.)
    h = jnp.tanh(jnp.dot(h.astype(jnp.bfloat16), w2_ref[...],
                         preferred_element_type=jnp.float32) + b2_ref[...])
    h = jnp.tanh(jnp.dot(h.astype(jnp.bfloat16), w3_ref[...],
                         preferred_element_type=jnp.float32) + b3_ref[...])
    # TODO(synk): if a bundle profile shows the EUP (tanh) binding, fold the
    # [tile_n, hidden<=64] slabs into full 128-lane views for the elementwise
    # region; not done here since pooling/DMA/step overhead dominate.

    # ---- global_add_pool: lane-major one-hot, one f32 MXU contraction --------
    batch_ids = batch_ref[...]                     # [1, TILE_N] int32 (-1 = pad)
    gids = jax.lax.broadcasted_iota(jnp.int32, (num_graphs, tile_n), 0)
    onehot = (batch_ids == gids).astype(jnp.float32)          # [G, TILE_N]
    acc_ref[...] += jax.lax.dot_general(           # keep pooled accumulation f32
        onehot, h, (((1,), (0,)), ((), ())),
        preferred_element_type=jnp.float32)

    # ---- finalize after the last node tile of this core's range --------------
    @pl.when(step == pl.num_programs(1) - 1)
    def _finalize():
        pooled = acc_ref[...]
        if finalize_in_kernel:
            out = jnp.tanh(jnp.dot(pooled.astype(jnp.bfloat16), wf_ref[...],
                                   preferred_element_type=jnp.float32)
                           + bf_ref[...])
            out_ref[...] = out.astype(out_ref.dtype)
        else:
            out_ref[...] = pooled[None].astype(out_ref.dtype)


def mlpnet_forward(params, x, edge_index, batch, num_graphs, *, tile_n=8192):
    """Forward pass of MlpNet. `edge_index` is unused by the reference model."""
    del edge_index
    n_nodes, in_channels = x.shape
    hidden = params["w2"].shape[0]

    split = _num_core_splits()
    cap = _vmem_cap_bytes()
    tile_n = _pick_tile_n(tile_n, n_nodes, in_channels, hidden, num_graphs, cap)

    n_pad = _round_up(max(n_nodes, 1), split * tile_n)
    tiles_per_split = n_pad // (split * tile_n)

    x_p = jnp.zeros((n_pad, in_channels), jnp.float32).at[:n_nodes].set(
        x.astype(jnp.float32))
    # Lane-major batch ids: each grid step DMAs one lane-dense [1, tile_n] int32
    # line; padded tail nodes carry id -1 so the one-hot drops them.
    batch_p = jnp.full((1, n_pad), -1, jnp.int32).at[0, :n_nodes].set(
        batch.astype(jnp.int32))

    finalize_in_kernel = (split == 1)
    kernel = functools.partial(mlpnet_kernel,
                               finalize_in_kernel=finalize_in_kernel)

    const = lambda c, i: (0, 0)
    node_map = lambda c, i: (c * tiles_per_split + i, 0)
    batch_map = lambda c, i: (0, c * tiles_per_split + i)

    in_specs = [
        pl.BlockSpec((tile_n, in_channels), node_map),        # x
        pl.BlockSpec((1, tile_n), batch_map),                 # batch ids
        pl.BlockSpec((in_channels, hidden), const),           # w1
        pl.BlockSpec((1, hidden), const),                     # b1
        pl.BlockSpec((hidden, hidden), const),                # w2
        pl.BlockSpec((1, hidden), const),                     # b2
        pl.BlockSpec((hidden, hidden), const),                # w3
        pl.BlockSpec((1, hidden), const),                     # b3
        pl.BlockSpec((hidden, EMBEDDING_SIZE), const),        # wf
        pl.BlockSpec((1, EMBEDDING_SIZE), const),             # bf
    ]

    if finalize_in_kernel:
        out_shape = jax.ShapeDtypeStruct((num_graphs, EMBEDDING_SIZE), jnp.float32)
        out_spec = pl.BlockSpec((num_graphs, EMBEDDING_SIZE), const)
    else:
        out_shape = jax.ShapeDtypeStruct((split, num_graphs, hidden), jnp.float32)
        out_spec = pl.BlockSpec((1, num_graphs, hidden), lambda c, i: (c, 0, 0))

    est = _vmem_bytes_per_tile(tile_n, in_channels, hidden, num_graphs)
    vmem_limit = int(min(cap, max(32 << 20, 2 * est)))

    res = pl.pallas_call(
        kernel,
        out_shape=out_shape,
        grid=(split, tiles_per_split),
        in_specs=in_specs,
        out_specs=out_spec,
        scratch_shapes=[pltpu.VMEM((num_graphs, hidden), jnp.float32)],
        compiler_params=pltpu.CompilerParams(
            # Node-tile axis stays "arbitrary" (sequential) so the pooled VMEM
            # accumulator is correct; the leading split axis is "parallel" and
            # only ever carries per-core *partial* accumulators, combined below.
            dimension_semantics=("parallel", "arbitrary"),
            vmem_limit_bytes=vmem_limit,
        ),
    )(x_p, batch_p,
      params["w1"], params["b1"],
      params["w2"], params["b2"],
      params["w3"], params["b3"],
      params["wf"], params["bf"])

    if finalize_in_kernel:
        return res
    # v7x path: combine the per-TensorCore partial pooled sums (trivial XLA add)
    # and apply fc1 + tanh on the tiny [num_graphs, hidden] result.
    pooled = jnp.sum(res, axis=0)
    return jnp.tanh(jnp.dot(pooled.astype(jnp.bfloat16), params["wf"],
                            preferred_element_type=jnp.float32) + params["bf"])


def init_params(key, in_channels, hidden_channels=64):
    """Synthetic init mirroring torch.nn.Linear shapes.

    Weights stored transposed ([in, out]) so the kernel computes x @ W + b.
    MXU-layer weights (w2, w3, wf) are stored in bf16; the tiny first layer
    (run on the VPU) and all biases stay f32.
    """
    def linear(k, fan_in, fan_out, w_dtype):
        kw, kb = jax.random.split(k)
        bound = 1.0 / jnp.sqrt(fan_in)
        w = jax.random.uniform(kw, (fan_in, fan_out), jnp.float32, -bound, bound)
        b = jax.random.uniform(kb, (1, fan_out), jnp.float32, -bound, bound)
        return w.astype(w_dtype), b

    k1, k2, k3, k4 = jax.random.split(key, 4)
    w1, b1 = linear(k1, in_channels, hidden_channels, jnp.float32)
    w2, b2 = linear(k2, hidden_channels, hidden_channels, jnp.bfloat16)
    w3, b3 = linear(k3, hidden_channels, hidden_channels, jnp.bfloat16)
    wf, bf = linear(k4, hidden_channels, EMBEDDING_SIZE, jnp.bfloat16)
    return dict(w1=w1, b1=b1, w2=w2, b2=b2, w3=w3, b3=b3, wf=wf, bf=bf)


if __name__ == "__main__":
    key = jax.random.PRNGKey(0)
    k_params, k_x = jax.random.split(key)

    in_channels = 4
    hidden_channels = 32
    num_graphs = 3
    graph_sizes = [250, 181, 169]    # 600 nodes total, uneven graph sizes
    n_nodes = sum(graph_sizes)

    params = init_params(k_params, in_channels, hidden_channels)

    x = jax.random.normal(k_x, (n_nodes, in_channels), jnp.float32)
    # simple chain edges (unused by the forward pass, kept for signature parity)
    edge_index = jnp.stack([jnp.arange(n_nodes - 1), jnp.arange(1, n_nodes)])
    batch = jnp.concatenate([jnp.full((s,), g, jnp.int32)
                             for g, s in enumerate(graph_sizes)])

    # tile_n=256 forces a multi-step node grid (init / accumulate / finalize and
    # a padded tail tile) even at this toy size; production default is 8192.
    out = mlpnet_forward(params, x, edge_index, batch, num_graphs, tile_n=256)
    jax.block_until_ready(out)

    # Pure-JAX reference mirroring the kernel numerics (VPU conv1, bf16 MXU
    # layers, f32 pooled accumulation).
    h = jnp.broadcast_to(params["b1"], (n_nodes, hidden_channels)).astype(jnp.float32)
    for k in range(in_channels):
        h = h + x[:, k:k + 1] * params["w1"][k:k + 1, :]
    h = jnp.tanh(h)
    h = jnp.tanh(jnp.dot(h.astype(jnp.bfloat16), params["w2"],
                         preferred_element_type=jnp.float32) + params["b2"])
    h = jnp.tanh(jnp.dot(h.astype(jnp.bfloat16), params["w3"],
                         preferred_element_type=jnp.float32) + params["b3"])
    pooled = jax.ops.segment_sum(h, batch, num_segments=num_graphs)
    ref = jnp.tanh(jnp.dot(pooled.astype(jnp.bfloat16), params["wf"],
                           preferred_element_type=jnp.float32) + params["bf"])

    assert out.shape == (num_graphs, EMBEDDING_SIZE)
    assert jnp.allclose(out, ref, atol=1e-2, rtol=1e-2), (out, ref)

    print("KERNEL_OK")
</pallas_src>

<mosaic_0001>
module attributes {stable_mosaic.version = 11 : i64} {
  func.func @mlpnet_kernel(%arg0: i32, %arg1: i32, %arg2: memref<256x4xf32, #tpu.memory_space<vmem>>, %arg3: memref<1x256xi32, #tpu.memory_space<vmem>>, %arg4: memref<4x32xf32, #tpu.memory_space<vmem>>, %arg5: memref<1x32xf32, #tpu.memory_space<vmem>>, %arg6: memref<32x32xbf16, #tpu.memory_space<vmem>>, %arg7: memref<1x32xf32, #tpu.memory_space<vmem>>, %arg8: memref<32x32xbf16, #tpu.memory_space<vmem>>, %arg9: memref<1x32xf32, #tpu.memory_space<vmem>>, %arg10: memref<32x10xbf16, #tpu.memory_space<vmem>>, %arg11: memref<1x10xf32, #tpu.memory_space<vmem>>, %arg12: memref<3x10xf32, #tpu.memory_space<vmem>>, %arg13: memref<3x32xf32, #tpu.memory_space<vmem>>) attributes {dimension_semantics = [#tpu.dimension_semantics<parallel>, #tpu.dimension_semantics<arbitrary>], iteration_bounds = array<i64: 1, 3>, scalar_prefetch = 0 : i64, scratch_operands = 1 : i64, tpu.core_type = #tpu.core_type<tc>, window_params = [{transform_indices = @transform_0, window_bounds = array<i64: 256, 4>}, {transform_indices = @transform_1, window_bounds = array<i64: 1, 256>}, {pipeline_mode = #tpu.pipeline_mode<synchronous>, transform_indices = @transform_2, window_bounds = array<i64: 4, 32>}, {pipeline_mode = #tpu.pipeline_mode<synchronous>, transform_indices = @transform_3, window_bounds = array<i64: 1, 32>}, {pipeline_mode = #tpu.pipeline_mode<synchronous>, transform_indices = @transform_4, window_bounds = array<i64: 32, 32>}, {pipeline_mode = #tpu.pipeline_mode<synchronous>, transform_indices = @transform_5, window_bounds = array<i64: 1, 32>}, {pipeline_mode = #tpu.pipeline_mode<synchronous>, transform_indices = @transform_6, window_bounds = array<i64: 32, 32>}, {pipeline_mode = #tpu.pipeline_mode<synchronous>, transform_indices = @transform_7, window_bounds = array<i64: 1, 32>}, {pipeline_mode = #tpu.pipeline_mode<synchronous>, transform_indices = @transform_8, window_bounds = array<i64: 32, 10>}, {pipeline_mode = #tpu.pipeline_mode<synchronous>, transform_indices = @transform_9, window_bounds = array<i64: 1, 10>}, {pipeline_mode = #tpu.pipeline_mode<synchronous>, transform_indices = @transform_10, window_bounds = array<i64: 3, 10>}]} {
    %c0_i32 = arith.constant 0 : i32
    %0 = arith.cmpi eq, %arg1, %c0_i32 : i32
    %1 = arith.extui %0 : i1 to i32
    %c0_i32_0 = arith.constant 0 : i32
    %2 = arith.cmpi ne, %1, %c0_i32_0 : i32
    scf.if %2 {
      %cst_23 = arith.constant 0.000000e+00 : f32
      %60 = vector.broadcast %cst_23 : f32 to vector<3x32xf32>
      %c0_24 = arith.constant 0 : index
      %c0_25 = arith.constant 0 : index
      %61 = vector.load %arg13[%c0_24, %c0_25] : memref<3x32xf32, #tpu.memory_space<vmem>>, vector<3x32xf32>
      tpu.vector_store %arg13[%c0_24, %c0_25], %60 {strides = array<i32>} : memref<3x32xf32, #tpu.memory_space<vmem>>, vector<3x32xf32>,
    } else {
    }
    %c0 = arith.constant 0 : index
    %c0_1 = arith.constant 0 : index
    %3 = vector.load %arg2[%c0, %c0_1] : memref<256x4xf32, #tpu.memory_space<vmem>>, vector<256x4xf32>
    %c0_2 = arith.constant 0 : index
    %c0_3 = arith.constant 0 : index
    %4 = vector.load %arg4[%c0_2, %c0_3] : memref<4x32xf32, #tpu.memory_space<vmem>>, vector<4x32xf32>
    %c0_4 = arith.constant 0 : index
    %c0_5 = arith.constant 0 : index
    %5 = vector.load %arg5[%c0_4, %c0_5] : memref<1x32xf32, #tpu.memory_space<vmem>>, vector<1x32xf32>
    %6 = vector.shape_cast %5 : vector<1x32xf32> to vector<1x32xf32>
    %7 = vector.broadcast %6 : vector<1x32xf32> to vector<256x32xf32>
    %8 = vector.extract_strided_slice %3 {offsets = [0, 0], sizes = [256, 1], strides = [1, 1]} : vector<256x4xf32> to vector<256x1xf32>
    %9 = vector.extract_strided_slice %4 {offsets = [0, 0], sizes = [1, 32], strides = [1, 1]} : vector<4x32xf32> to vector<1x32xf32>
    %10 = vector.broadcast %8 : vector<256x1xf32> to vector<256x32xf32>
    %11 = vector.broadcast %9 : vector<1x32xf32> to vector<256x32xf32>
    %12 = arith.mulf %10, %11 : vector<256x32xf32>
    %13 = arith.addf %7, %12 : vector<256x32xf32>
    %14 = vector.extract_strided_slice %3 {offsets = [0, 1], sizes = [256, 1], strides = [1, 1]} : vector<256x4xf32> to vector<256x1xf32>
    %15 = vector.extract_strided_slice %4 {offsets = [1, 0], sizes = [1, 32], strides = [1, 1]} : vector<4x32xf32> to vector<1x32xf32>
    %16 = vector.broadcast %14 : vector<256x1xf32> to vector<256x32xf32>
    %17 = vector.broadcast %15 : vector<1x32xf32> to vector<256x32xf32>
    %18 = arith.mulf %16, %17 : vector<256x32xf32>
    %19 = arith.addf %13, %18 : vector<256x32xf32>
    %20 = vector.extract_strided_slice %3 {offsets = [0, 2], sizes = [256, 1], strides = [1, 1]} : vector<256x4xf32> to vector<256x1xf32>
    %21 = vector.extract_strided_slice %4 {offsets = [2, 0], sizes = [1, 32], strides = [1, 1]} : vector<4x32xf32> to vector<1x32xf32>
    %22 = vector.broadcast %20 : vector<256x1xf32> to vector<256x32xf32>
    %23 = vector.broadcast %21 : vector<1x32xf32> to vector<256x32xf32>
    %24 = arith.mulf %22, %23 : vector<256x32xf32>
    %25 = arith.addf %19, %24 : vector<256x32xf32>
    %26 = vector.extract_strided_slice %3 {offsets = [0, 3], sizes = [256, 1], strides = [1, 1]} : vector<256x4xf32> to vector<256x1xf32>
    %27 = vector.extract_strided_slice %4 {offsets = [3, 0], sizes = [1, 32], strides = [1, 1]} : vector<4x32xf32> to vector<1x32xf32>
    %28 = vector.broadcast %26 : vector<256x1xf32> to vector<256x32xf32>
    %29 = vector.broadcast %27 : vector<1x32xf32> to vector<256x32xf32>
    %30 = arith.mulf %28, %29 : vector<256x32xf32>
    %31 = arith.addf %25, %30 : vector<256x32xf32>
    %32 = math.tanh %31 : vector<256x32xf32>
    %33 = arith.truncf %32 : vector<256x32xf32> to vector<256x32xbf16>
    %c0_6 = arith.constant 0 : index
    %c0_7 = arith.constant 0 : index
    %34 = vector.load %arg6[%c0_6, %c0_7] : memref<32x32xbf16, #tpu.memory_space<vmem>>, vector<32x32xbf16>
    %cst = arith.constant dense<0.000000e+00> : vector<256x32xf32>
    %35 = tpu.matmul %33, %34, %cst {dimension_numbers = #tpu.dot_dimension_numbers<[1], [0], [0], [1], [0, 0, 1, 1], [], []>} : vector<256x32xbf16>, vector<32x32xbf16>, vector<256x32xf32> -> vector<256x32xf32>
    %c0_8 = arith.constant 0 : index
    %c0_9 = arith.constant 0 : index
    %36 = vector.load %arg7[%c0_8, %c0_9] : memref<1x32xf32, #tpu.memory_space<vmem>>, vector<1x32xf32>
    %37 = vector.broadcast %36 : vector<1x32xf32> to vector<256x32xf32>
    %38 = arith.addf %35, %37 : vector<256x32xf32>
    %39 = math.tanh %38 : vector<256x32xf32>
    %40 = arith.truncf %39 : vector<256x32xf32> to vector<256x32xbf16>
    %c0_10 = arith.constant 0 : index
    %c0_11 = arith.constant 0 : index
    %41 = vector.load %arg8[%c0_10, %c0_11] : memref<32x32xbf16, #tpu.memory_space<vmem>>, vector<32x32xbf16>
    %cst_12 = arith.constant dense<0.000000e+00> : vector<256x32xf32>
    %42 = tpu.matmul %40, %41, %cst_12 {dimension_numbers = #tpu.dot_dimension_numbers<[1], [0], [0], [1], [0, 0, 1, 1], [], []>} : vector<256x32xbf16>, vector<32x32xbf16>, vector<256x32xf32> -> vector<256x32xf32>
    %c0_13 = arith.constant 0 : index
    %c0_14 = arith.constant 0 : index
    %43 = vector.load %arg9[%c0_13, %c0_14] : memref<1x32xf32, #tpu.memory_space<vmem>>, vector<1x32xf32>
    %44 = vector.broadcast %43 : vector<1x32xf32> to vector<256x32xf32>
    %45 = arith.addf %42, %44 : vector<256x32xf32>
    %46 = math.tanh %45 : vector<256x32xf32>
    %c0_15 = arith.constant 0 : index
    %c0_16 = arith.constant 0 : index
    %47 = vector.load %arg3[%c0_15, %c0_16] : memref<1x256xi32, #tpu.memory_space<vmem>>, vector<1x256xi32>
    %48 = tpu.iota {dimensions = array<i32: 0>} : vector<3x256xi32>
    %49 = vector.broadcast %47 : vector<1x256xi32> to vector<3x256xi32>
    %50 = arith.cmpi eq, %49, %48 : vector<3x256xi32>
    %51 = arith.extui %50 : vector<3x256xi1> to vector<3x256xi32>
    %52 = arith.sitofp %51 : vector<3x256xi32> to vector<3x256xf32>
    %c0_17 = arith.constant 0 : index
    %c0_18 = arith.constant 0 : index
    %53 = vector.load %arg13[%c0_17, %c0_18] : memref<3x32xf32, #tpu.memory_space<vmem>>, vector<3x32xf32>
    %cst_19 = arith.constant dense<0.000000e+00> : vector<3x32xf32>
    %54 = tpu.matmul %52, %46, %cst_19 {dimension_numbers = #tpu.dot_dimension_numbers<[1], [0], [0], [1], [0, 0, 1, 1], [], []>} : vector<3x256xf32>, vector<256x32xf32>, vector<3x32xf32> -> vector<3x32xf32>
    %55 = arith.addf %53, %54 : vector<3x32xf32>
    %c0_20 = arith.constant 0 : index
    %c0_21 = arith.constant 0 : index
    %56 = vector.load %arg13[%c0_20, %c0_21] : memref<3x32xf32, #tpu.memory_space<vmem>>, vector<3x32xf32>
    tpu.vector_store %arg13[%c0_20, %c0_21], %55 {strides = array<i32>} : memref<3x32xf32, #tpu.memory_space<vmem>>, vector<3x32xf32>,
    %c2_i32 = arith.constant 2 : i32
    %57 = arith.cmpi eq, %arg1, %c2_i32 : i32
    %58 = arith.extui %57 : i1 to i32
    %c0_i32_22 = arith.constant 0 : i32
    %59 = arith.cmpi ne, %58, %c0_i32_22 : i32
    scf.if %59 {
      %c0_23 = arith.constant 0 : index
      %c0_24 = arith.constant 0 : index
      %60 = vector.load %arg13[%c0_23, %c0_24] : memref<3x32xf32, #tpu.memory_space<vmem>>, vector<3x32xf32>
      %61 = arith.truncf %60 : vector<3x32xf32> to vector<3x32xbf16>
      %c0_25 = arith.constant 0 : index
      %c0_26 = arith.constant 0 : index
      %62 = vector.load %arg10[%c0_25, %c0_26] : memref<32x10xbf16, #tpu.memory_space<vmem>>, vector<32x10xbf16>
      %cst_27 = arith.constant dense<0.000000e+00> : vector<3x10xf32>
      %63 = tpu.matmul %61, %62, %cst_27 {dimension_numbers = #tpu.dot_dimension_numbers<[1], [0], [0], [1], [0, 0, 1, 1], [], []>} : vector<3x32xbf16>, vector<32x10xbf16>, vector<3x10xf32> -> vector<3x10xf32>
      %c0_28 = arith.constant 0 : index
      %c0_29 = arith.constant 0 : index
      %64 = vector.load %arg11[%c0_28, %c0_29] : memref<1x10xf32, #tpu.memory_space<vmem>>, vector<1x10xf32>
      %65 = vector.broadcast %64 : vector<1x10xf32> to vector<3x10xf32>
      %66 = arith.addf %63, %65 : vector<3x10xf32>
      %67 = math.tanh %66 : vector<3x10xf32>
      %c0_30 = arith.constant 0 : index
      %c0_31 = arith.constant 0 : index
      %68 = vector.load %arg12[%c0_30, %c0_31] : memref<3x10xf32, #tpu.memory_space<vmem>>, vector<3x10xf32>
      tpu.vector_store %arg12[%c0_30, %c0_31], %67 {strides = array<i32>} : memref<3x10xf32, #tpu.memory_space<vmem>>, vector<3x10xf32>,
    } else {
    }
    return
  }
  func.func @transform_0(%arg0: i32, %arg1: i32) -> (i32, i32) {
    %c3_i32 = arith.constant 3 : i32
    %0 = arith.muli %arg0, %c3_i32 : i32
    %1 = arith.addi %0, %arg1 : i32
    %c0_i32 = arith.constant 0 : i32
    %c0_i32_0 = arith.constant 0 : i32
    return %1, %c0_i32 : i32, i32
  }
  func.func @transform_1(%arg0: i32, %arg1: i32) -> (i32, i32) {
    %c3_i32 = arith.constant 3 : i32
    %0 = arith.muli %arg0, %c3_i32 : i32
    %1 = arith.addi %0, %arg1 : i32
    %c0_i32 = arith.constant 0 : i32
    %c0_i32_0 = arith.constant 0 : i32
    return %c0_i32, %1 : i32, i32
  }
  func.func @transform_2(%arg0: i32, %arg1: i32) -> (i32, i32) {
    %c0_i32 = arith.constant 0 : i32
    %c0_i32_0 = arith.constant 0 : i32
    %c0_i32_1 = arith.constant 0 : i32
    return %c0_i32, %c0_i32_0 : i32, i32
  }
  func.func @transform_3(%arg0: i32, %arg1: i32) -> (i32, i32) {
    %c0_i32 = arith.constant 0 : i32
    %c0_i32_0 = arith.constant 0 : i32
    %c0_i32_1 = arith.constant 0 : i32
    return %c0_i32, %c0_i32_0 : i32, i32
  }
  func.func @transform_4(%arg0: i32, %arg1: i32) -> (i32, i32) {
    %c0_i32 = arith.constant 0 : i32
    %c0_i32_0 = arith.constant 0 : i32
    %c0_i32_1 = arith.constant 0 : i32
    return %c0_i32, %c0_i32_0 : i32, i32
  }
  func.func @transform_5(%arg0: i32, %arg1: i32) -> (i32, i32) {
    %c0_i32 = arith.constant 0 : i32
    %c0_i32_0 = arith.constant 0 : i32
    %c0_i32_1 = arith.constant 0 : i32
    return %c0_i32, %c0_i32_0 : i32, i32
  }
  func.func @transform_6(%arg0: i32, %arg1: i32) -> (i32, i32) {
    %c0_i32 = arith.constant 0 : i32
    %c0_i32_0 = arith.constant 0 : i32
    %c0_i32_1 = arith.constant 0 : i32
    return %c0_i32, %c0_i32_0 : i32, i32
  }
  func.func @transform_7(%arg0: i32, %arg1: i32) -> (i32, i32) {
    %c0_i32 = arith.constant 0 : i32
    %c0_i32_0 = arith.constant 0 : i32
    %c0_i32_1 = arith.constant 0 : i32
    return %c0_i32, %c0_i32_0 : i32, i32
  }
  func.func @transform_8(%arg0: i32, %arg1: i32) -> (i32, i32) {
    %c0_i32 = arith.constant 0 : i32
    %c0_i32_0 = arith.constant 0 : i32
    %c0_i32_1 = arith.constant 0 : i32
    return %c0_i32, %c0_i32_0 : i32, i32
  }
  func.func @transform_9(%arg0: i32, %arg1: i32) -> (i32, i32) {
    %c0_i32 = arith.constant 0 : i32
    %c0_i32_0 = arith.constant 0 : i32
    %c0_i32_1 = arith.constant 0 : i32
    return %c0_i32, %c0_i32_0 : i32, i32
  }
  func.func @transform_10(%arg0: i32, %arg1: i32) -> (i32, i32) {
    %c0_i32 = arith.constant 0 : i32
    %c0_i32_0 = arith.constant 0 : i32
    %c0_i32_1 = arith.constant 0 : i32
    return %c0_i32, %c0_i32_0 : i32, i32
  }
}

</mosaic_0001>

<llo_original>
// kernel: tpu_custom_call.1
$region0: #{tpu_custom_call.1}
  #allocation0 [shape = 'u32[]', space=smem, size = 0x4, offset = 0x4, fixed_abs, tag = 'smem constant byte address 0x4 - core index']
  #allocation1 [shape = 'u32[144,128]{1,0:T(1,128)}', space=vmem, size = 0x12000, scoped, tag = 'internal scratch']
  #allocation2 [shape = 'f32[3,32]{1,0:T(4,128)}', space=vmem, size = 0x800, scoped, tag = 'scratch operand']
  %s0 = inlined_call_operand.vmem [shape: f32[768,4], index: 0, kind: input, shape index: {}]
  %s1 = inlined_call_operand.vmem [shape: s32[1,768], index: 1, kind: input, shape index: {}]
  %s2 = inlined_call_operand.vmem [shape: f32[4,32], index: 2, kind: input, shape index: {}]
  %s3 = inlined_call_operand.vmem [shape: f32[1,32], index: 3, kind: input, shape index: {}]
  %s4 = inlined_call_operand.vmem [shape: bf16[32,32], index: 4, kind: input, shape index: {}]
  %s5 = inlined_call_operand.vmem [shape: f32[1,32], index: 5, kind: input, shape index: {}]
  %s6 = inlined_call_operand.vmem [shape: bf16[32,32], index: 6, kind: input, shape index: {}]
  %s7 = inlined_call_operand.vmem [shape: f32[1,32], index: 7, kind: input, shape index: {}]
  %s8 = inlined_call_operand.vmem [shape: bf16[32,10], index: 8, kind: input, shape index: {}]
  %s9 = inlined_call_operand.vmem [shape: f32[1,10], index: 9, kind: input, shape index: {}]
  %s10 = inlined_call_operand.hbm [shape: f32[3,10], index: 10, kind: output, shape index: {}]
  %s11 = sld [smem:[#allocation0]]
  $region81: #{tpu_custom_call.1} parent=0
    _
  %s13 = ssub.s32 1, %s11
  %s14 = scalar_select 0, %s13, %s11
  $region1: #{tpu_custom_call.1} parent=0
    #allocation3 [shape = 'u8[2048]{0}', space=vmem, size = 0x800, scoped, tag = 'output window, operand 0, single buffered']
    #allocation4 [shape = 's32[2]{0}', space=sflag, size = 0x8, scoped, tag = 'scoped memory for tpu_custom_call.1']
    %15 = vsyncpa [#allocation4], 0
    loop: start=0, step=1, limit=5
    $region2: #{tpu_custom_call.1} parent=1 // loop_pre_header
      _
    $region3: #{tpu_custom_call.1} parent=1 // loop_header
      %s17 = sphi 0, %s21
      %p18 = scmp.ge.s32.totalorder %s17, 5
      %s24 = sphi 0, %s36
      %s25 = sphi 0, %s32
      %s26 = sphi 0, %s24
      %s27 = sphi 0, %s25
      %s28 = sphi 0, %s26
      %s29 = sphi 0, %s27
      %s43 = sphi 0, %s45
      %s46 = sphi 0, %s43
      %s47 = sphi 0, %s46
      %s63 = sphi 0, %s47
      %s73 = sphi 0, %s75
      %s76 = sphi 0, %s73
      %s77 = sphi 0, %s76
      %s93 = sphi 0, %s77
      %s97 = sphi 0, %s97
      %s99 = sphi 0, %s97
      %s100 = sphi 0, %s99
      %s114 = sphi 0, %s100
      %s118 = sphi 0, %s118
      %s120 = sphi 0, %s118
      %s121 = sphi 0, %s120
      %s135 = sphi 0, %s121
      %s139 = sphi 0, %s139
      %s141 = sphi 0, %s139
      %s142 = sphi 0, %s141
      %s156 = sphi 0, %s142
      %s160 = sphi 0, %s160
      %s162 = sphi 0, %s160
      %s163 = sphi 0, %s162
      %s177 = sphi 0, %s163
      %s181 = sphi 0, %s181
      %s183 = sphi 0, %s181
      %s184 = sphi 0, %s183
      %s198 = sphi 0, %s184
      %s202 = sphi 0, %s202
      %s204 = sphi 0, %s202
      %s205 = sphi 0, %s204
      %s219 = sphi 0, %s205
      %s223 = sphi 0, %s223
      %s225 = sphi 0, %s223
      %s226 = sphi 0, %s225
      %s240 = sphi 0, %s226
      %s244 = sphi 0, %s244
      %s246 = sphi 0, %s244
      %s247 = sphi 0, %s246
      %s261 = sphi 0, %s247
      %s265 = sphi 0, %s265
      %s267 = sphi 0, %s265
      %s268 = sphi 0, %s267
      %s282 = sphi 0, %s268
    $region4: #{tpu_custom_call.1} parent=1 // loop_header_branch
      %20 = sbr.rel (%p18) target = $region8
    $region5: #{tpu_custom_call.1} parent=1 // loop_body
      %s22 = ssub.s32 %s17, 1
      %s23 = ssub.s32 %s17, 2
      %s30 = sadd.s32 1, %s25
      %p31 = scmp.ge.s32.totalorder %s30, 3
      %s32 = scalar_select %p31, 0, %s30
      %s33 = sadd.s32 1, %s24
      %s34 = scalar_select %p31, %s33, %s24
      %p35 = scmp.ge.s32.totalorder %s34, 1
      %s36 = scalar_select %p35, 0, %s34
      %s37 = smul.u32 %s24, 3
      %s38 = sadd.s32 %s37, %s25
      %s39 = smul.u32 %s36, 3
      %s40 = sadd.s32 %s39, %s32
      %s41 = ssub.s32 %s38, %s40
      %p42 = scmp.eq.s32.totalorder %s41, 0
      %s44 = sadd.s32 %s43, 1
      %s45 = scalar_select %p42, %s43, %s44
      %p48 = pneg %p42
      %p49 = scmp.eq.s32.totalorder %s17, 2
      %p50 = por %p48, %p49
      %p51 = scmp.ne.s32.totalorder %s43, %s46
      %p52 = scmp.eq.s32.totalorder %s17, 0
      %p53 = por %p51, %p52
      %p54 = scmp.ne.s32.totalorder %s43, %s46
      %p55 = scmp.eq.s32.totalorder %s22, 2
      %p56 = por %p54, %p55
      %p57 = scmp.ne.s32.totalorder %s46, %s47
      %p58 = scmp.eq.s32.totalorder %s22, 0
      %p59 = por %p57, %p58
      %p60 = scmp.ne.s32.totalorder %s46, %s47
      %p61 = scmp.eq.s32.totalorder %s23, 2
      %p62 = por %p60, %p61
      %p64 = scmp.ne.s32.totalorder %s47, %s63
      %p65 = scmp.eq.s32.totalorder %s23, 0
      %p66 = por %p64, %p65
      %s67 = smul.u32 %s24, 3
      %s68 = sadd.s32 %s67, %s25
      %s69 = smul.u32 %s36, 3
      %s70 = sadd.s32 %s69, %s32
      %s71 = ssub.s32 %s68, %s70
      %p72 = scmp.eq.s32.totalorder %s71, 0
      %s74 = sadd.s32 %s73, 1
      %s75 = scalar_select %p72, %s73, %s74
      %p78 = pneg %p72
      %p79 = scmp.eq.s32.totalorder %s17, 2
      %p80 = por %p78, %p79
      %p81 = scmp.ne.s32.totalorder %s73, %s76
      %p82 = scmp.eq.s32.totalorder %s17, 0
      %p83 = por %p81, %p82
      %p84 = scmp.ne.s32.totalorder %s73, %s76
      %p85 = scmp.eq.s32.totalorder %s22, 2
      %p86 = por %p84, %p85
      %p87 = scmp.ne.s32.totalorder %s76, %s77
      %p88 = scmp.eq.s32.totalorder %s22, 0
      %p89 = por %p87, %p88
      %p90 = scmp.ne.s32.totalorder %s76, %s77
      %p91 = scmp.eq.s32.totalorder %s23, 2
      %p92 = por %p90, %p91
      %p94 = scmp.ne.s32.totalorder %s77, %s93
      %p95 = scmp.eq.s32.totalorder %s23, 0
      %p96 = por %p94, %p95
      %s98 = sadd.s32 %s97, 1
      %p101 = scmp.eq.s32.totalorder %s17, 2
      %p102 = scmp.ne.s32.totalorder %s97, %s99
      %p103 = scmp.eq.s32.totalorder %s17, 0
      %p104 = por %p102, %p103
      %p105 = scmp.ne.s32.totalorder %s97, %s99
      %p106 = scmp.eq.s32.totalorder %s22, 2
      %p107 = por %p105, %p106
      %p108 = scmp.ne.s32.totalorder %s99, %s100
      %p109 = scmp.eq.s32.totalorder %s22, 0
      %p110 = por %p108, %p109
      %p111 = scmp.ne.s32.totalorder %s99, %s100
      %p112 = scmp.eq.s32.totalorder %s23, 2
      %p113 = por %p111, %p112
      %p115 = scmp.ne.s32.totalorder %s100, %s114
      %p116 = scmp.eq.s32.totalorder %s23, 0
      %p117 = por %p115, %p116
      %s119 = sadd.s32 %s118, 1
      %p122 = scmp.eq.s32.totalorder %s17, 2
      %p123 = scmp.ne.s32.totalorder %s118, %s120
      %p124 = scmp.eq.s32.totalorder %s17, 0
      %p125 = por %p123, %p124
      %p126 = scmp.ne.s32.totalorder %s118, %s120
      %p127 = scmp.eq.s32.totalorder %s22, 2
      %p128 = por %p126, %p127
      %p129 = scmp.ne.s32.totalorder %s120, %s121
      %p130 = scmp.eq.s32.totalorder %s22, 0
      %p131 = por %p129, %p130
      %p132 = scmp.ne.s32.totalorder %s120, %s121
      %p133 = scmp.eq.s32.totalorder %s23, 2
      %p134 = por %p132, %p133
      %p136 = scmp.ne.s32.totalorder %s121, %s135
      %p137 = scmp.eq.s32.totalorder %s23, 0
      %p138 = por %p136, %p137
      %s140 = sadd.s32 %s139, 1
      %p143 = scmp.eq.s32.totalorder %s17, 2
      %p144 = scmp.ne.s32.totalorder %s139, %s141
      %p145 = scmp.eq.s32.totalorder %s17, 0
      %p146 = por %p144, %p145
      %p147 = scmp.ne.s32.totalorder %s139, %s141
      %p148 = scmp.eq.s32.totalorder %s22, 2
      %p149 = por %p147, %p148
      %p150 = scmp.ne.s32.totalorder %s141, %s142
      %p151 = scmp.eq.s32.totalorder %s22, 0
      %p152 = por %p150, %p151
      %p153 = scmp.ne.s32.totalorder %s141, %s142
      %p154 = scmp.eq.s32.totalorder %s23, 2
      %p155 = por %p153, %p154
      %p157 = scmp.ne.s32.totalorder %s142, %s156
      %p158 = scmp.eq.s32.totalorder %s23, 0
      %p159 = por %p157, %p158
      %s161 = sadd.s32 %s160, 1
      %p164 = scmp.eq.s32.totalorder %s17, 2
      %p165 = scmp.ne.s32.totalorder %s160, %s162
      %p166 = scmp.eq.s32.totalorder %s17, 0
      %p167 = por %p165, %p166
      %p168 = scmp.ne.s32.totalorder %s160, %s162
      %p169 = scmp.eq.s32.totalorder %s22, 2
      %p170 = por %p168, %p169
      %p171 = scmp.ne.s32.totalorder %s162, %s163
      %p172 = scmp.eq.s32.totalorder %s22, 0
      %p173 = por %p171, %p172
      %p174 = scmp.ne.s32.totalorder %s162, %s163
      %p175 = scmp.eq.s32.totalorder %s23, 2
      %p176 = por %p174, %p175
      %p178 = scmp.ne.s32.totalorder %s163, %s177
      %p179 = scmp.eq.s32.totalorder %s23, 0
      %p180 = por %p178, %p179
      %s182 = sadd.s32 %s181, 1
      %p185 = scmp.eq.s32.totalorder %s17, 2
      %p186 = scmp.ne.s32.totalorder %s181, %s183
      %p187 = scmp.eq.s32.totalorder %s17, 0
      %p188 = por %p186, %p187
      %p189 = scmp.ne.s32.totalorder %s181, %s183
      %p190 = scmp.eq.s32.totalorder %s22, 2
      %p191 = por %p189, %p190
      %p192 = scmp.ne.s32.totalorder %s183, %s184
      %p193 = scmp.eq.s32.totalorder %s22, 0
      %p194 = por %p192, %p193
      %p195 = scmp.ne.s32.totalorder %s183, %s184
      %p196 = scmp.eq.s32.totalorder %s23, 2
      %p197 = por %p195, %p196
      %p199 = scmp.ne.s32.totalorder %s184, %s198
      %p200 = scmp.eq.s32.totalorder %s23, 0
      %p201 = por %p199, %p200
      %s203 = sadd.s32 %s202, 1
      %p206 = scmp.eq.s32.totalorder %s17, 2
      %p207 = scmp.ne.s32.totalorder %s202, %s204
      %p208 = scmp.eq.s32.totalorder %s17, 0
      %p209 = por %p207, %p208
      %p210 = scmp.ne.s32.totalorder %s202, %s204
      %p211 = scmp.eq.s32.totalorder %s22, 2
      %p212 = por %p210, %p211
      %p213 = scmp.ne.s32.totalorder %s204, %s205
      %p214 = scmp.eq.s32.totalorder %s22, 0
      %p215 = por %p213, %p214
      %p216 = scmp.ne.s32.totalorder %s204, %s205
      %p217 = scmp.eq.s32.totalorder %s23, 2
      %p218 = por %p216, %p217
      %p220 = scmp.ne.s32.totalorder %s205, %s219
      %p221 = scmp.eq.s32.totalorder %s23, 0
      %p222 = por %p220, %p221
      %s224 = sadd.s32 %s223, 1
      %p227 = scmp.eq.s32.totalorder %s17, 2
      %p228 = scmp.ne.s32.totalorder %s223, %s225
      %p229 = scmp.eq.s32.totalorder %s17, 0
      %p230 = por %p228, %p229
      %p231 = scmp.ne.s32.totalorder %s223, %s225
      %p232 = scmp.eq.s32.totalorder %s22, 2
      %p233 = por %p231, %p232
      %p234 = scmp.ne.s32.totalorder %s225, %s226
      %p235 = scmp.eq.s32.totalorder %s22, 0
      %p236 = por %p234, %p235
      %p237 = scmp.ne.s32.totalorder %s225, %s226
      %p238 = scmp.eq.s32.totalorder %s23, 2
      %p239 = por %p237, %p238
      %p241 = scmp.ne.s32.totalorder %s226, %s240
      %p242 = scmp.eq.s32.totalorder %s23, 0
      %p243 = por %p241, %p242
      %s245 = sadd.s32 %s244, 1
      %p248 = scmp.eq.s32.totalorder %s17, 2
      %p249 = scmp.ne.s32.totalorder %s244, %s246
      %p250 = scmp.eq.s32.totalorder %s17, 0
      %p251 = por %p249, %p250
      %p252 = scmp.ne.s32.totalorder %s244, %s246
      %p253 = scmp.eq.s32.totalorder %s22, 2
      %p254 = por %p252, %p253
      %p255 = scmp.ne.s32.totalorder %s246, %s247
      %p256 = scmp.eq.s32.totalorder %s22, 0
      %p257 = por %p255, %p256
      %p258 = scmp.ne.s32.totalorder %s246, %s247
      %p259 = scmp.eq.s32.totalorder %s23, 2
      %p260 = por %p258, %p259
      %p262 = scmp.ne.s32.totalorder %s247, %s261
      %p263 = scmp.eq.s32.totalorder %s23, 0
      %p264 = por %p262, %p263
      %s266 = sadd.s32 %s265, 1
      %p269 = scmp.eq.s32.totalorder %s17, 2
      %p270 = scmp.ne.s32.totalorder %s265, %s267
      %p271 = scmp.eq.s32.totalorder %s17, 0
      %p272 = por %p270, %p271
      %p273 = scmp.ne.s32.totalorder %s265, %s267
      %p274 = scmp.eq.s32.totalorder %s22, 2
      %p275 = por %p273, %p274
      %p276 = scmp.ne.s32.totalorder %s267, %s268
      %p277 = scmp.eq.s32.totalorder %s22, 0
      %p278 = por %p276, %p277
      %p279 = scmp.ne.s32.totalorder %s267, %s268
      %p280 = scmp.eq.s32.totalorder %s23, 2
      %p281 = por %p279, %p280
      %p283 = scmp.ne.s32.totalorder %s268, %s282
      %p284 = scmp.eq.s32.totalorder %s23, 0
      %p285 = por %p283, %p284
      %p286 = scmp.le.s32.totalorder 1, %s17
      %p287 = scmp.lt.s32.totalorder %s17, 4
      %p288 = pnand %p286, %p287
      %p289 = pneg %p288
      // Predicated region
      $region9: #{tpu_custom_call.1} parent=5 // pred_check
        _
      $region10: #{tpu_custom_call.1} parent=5 // pred_check_branch
        %291 = sbr.rel (%p288) target = $region12
      $region11: #{tpu_custom_call.1} parent=5 // pred_region
        %s292 = ssub.s32 %s17, 1
        // Predicated region
        $region13: #{tpu_custom_call.1} parent=11 // pred_check
          %p293 = pneg %p110
        $region14: #{tpu_custom_call.1} parent=11 // pred_check_branch
          %295 = sbr.rel (%p293) target = $region16
        $region15: #{tpu_custom_call.1} parent=11 // pred_region
          _
        $region16: #{tpu_custom_call.1} parent=11 // pred_fallthru
          _
        // Predicated region
        $region17: #{tpu_custom_call.1} parent=11 // pred_check
          %p296 = pneg %p131
        $region18: #{tpu_custom_call.1} parent=11 // pred_check_branch
          %298 = sbr.rel (%p296) target = $region20
        $region19: #{tpu_custom_call.1} parent=11 // pred_region
          _
        $region20: #{tpu_custom_call.1} parent=11 // pred_fallthru
          _
        // Predicated region
        $region21: #{tpu_custom_call.1} parent=11 // pred_check
          %p299 = pneg %p152
        $region22: #{tpu_custom_call.1} parent=11 // pred_check_branch
          %301 = sbr.rel (%p299) target = $region24
        $region23: #{tpu_custom_call.1} parent=11 // pred_region
          _
        $region24: #{tpu_custom_call.1} parent=11 // pred_fallthru
          _
        // Predicated region
        $region25: #{tpu_custom_call.1} parent=11 // pred_check
          %p302 = pneg %p173
        $region26: #{tpu_custom_call.1} parent=11 // pred_check_branch
          %304 = sbr.rel (%p302) target = $region28
        $region27: #{tpu_custom_call.1} parent=11 // pred_region
          _
        $region28: #{tpu_custom_call.1} parent=11 // pred_fallthru
          _
        // Predicated region
        $region29: #{tpu_custom_call.1} parent=11 // pred_check
          %p305 = pneg %p194
        $region30: #{tpu_custom_call.1} parent=11 // pred_check_branch
          %307 = sbr.rel (%p305) target = $region32
        $region31: #{tpu_custom_call.1} parent=11 // pred_region
          _
        $region32: #{tpu_custom_call.1} parent=11 // pred_fallthru
          _
        // Predicated region
        $region33: #{tpu_custom_call.1} parent=11 // pred_check
          %p308 = pneg %p215
        $region34: #{tpu_custom_call.1} parent=11 // pred_check_branch
          %310 = sbr.rel (%p308) target = $region36
        $region35: #{tpu_custom_call.1} parent=11 // pred_region
          _
        $region36: #{tpu_custom_call.1} parent=11 // pred_fallthru
          _
        // Predicated region
        $region37: #{tpu_custom_call.1} parent=11 // pred_check
          %p311 = pneg %p236
        $region38: #{tpu_custom_call.1} parent=11 // pred_check_branch
          %313 = sbr.rel (%p311) target = $region40
        $region39: #{tpu_custom_call.1} parent=11 // pred_region
          _
        $region40: #{tpu_custom_call.1} parent=11 // pred_fallthru
          _
        // Predicated region
        $region41: #{tpu_custom_call.1} parent=11 // pred_check
          %p314 = pneg %p257
        $region42: #{tpu_custom_call.1} parent=11 // pred_check_branch
          %316 = sbr.rel (%p314) target = $region44
        $region43: #{tpu_custom_call.1} parent=11 // pred_region
          _
        $region44: #{tpu_custom_call.1} parent=11 // pred_fallthru
          _
      $region12: #{tpu_custom_call.1} parent=5 // pred_fallthru
        _
      %p317 = scmp.lt.s32.totalorder %s17, 3
      // Predicated region
      $region45: #{tpu_custom_call.1} parent=5 // pred_check
        %p318 = pneg %p317
      $region46: #{tpu_custom_call.1} parent=5 // pred_check_branch
        %320 = sbr.rel (%p318) target = $region48
      $region47: #{tpu_custom_call.1} parent=5 // pred_region
        // Predicated region
        $region49: #{tpu_custom_call.1} parent=47 // pred_check
          %p321 = pneg %p53
        $region50: #{tpu_custom_call.1} parent=47 // pred_check_branch
          %323 = sbr.rel (%p321) target = $region52
        $region51: #{tpu_custom_call.1} parent=47 // pred_region
          %s324 = smul.u32 %s24, 3
          %s325 = sadd.s32 %s324, %s25
          %s326 = smul.u32 32, %s325
          %p327 = scmp.lt.s32.totalorder %s326, 95
          %s328 = scalar_select %p327, %s326, 95
          %s329 = smul.addr %s328, 8
          %s330 = scalar_lea.vmem %s0, %s329
          %s331 = smul.u32 %s24, 3
          %s332 = sadd.s32 %s331, %s25
          %s333 = smul.u32 32, %s332
        $region52: #{tpu_custom_call.1} parent=47 // pred_fallthru
          _
        // Predicated region
        $region53: #{tpu_custom_call.1} parent=47 // pred_check
          %p334 = pneg %p83
        $region54: #{tpu_custom_call.1} parent=47 // pred_check_branch
          %336 = sbr.rel (%p334) target = $region56
        $region55: #{tpu_custom_call.1} parent=47 // pred_region
          %s337 = smul.u32 %s24, 3
          %s338 = sadd.s32 %s337, %s25
          %s339 = smul.u32 2, %s338
          %p340 = scmp.lt.s32.totalorder %s339, 5
          %s341 = scalar_select %p340, %s339, 5
          %s342 = scalar_lea.vmem %s1, %s341
          %s343 = smul.u32 %s24, 3
          %s344 = sadd.s32 %s343, %s25
          %s345 = smul.u32 2, %s344
        $region56: #{tpu_custom_call.1} parent=47 // pred_fallthru
          _
      $region48: #{tpu_custom_call.1} parent=5 // pred_fallthru
        _
      %p346 = scmp.le.s32.totalorder 1, %s17
      %p347 = scmp.lt.s32.totalorder %s17, 4
      %p348 = pnand %p346, %p347
      %p349 = pneg %p348
      // Predicated region
      $region57: #{tpu_custom_call.1} parent=5 // pred_check
        _
      $region58: #{tpu_custom_call.1} parent=5 // pred_check_branch
        %351 = sbr.rel (%p348) target = $region60
      $region59: #{tpu_custom_call.1} parent=5 // pred_region
        %s352 = ssub.s32 %s17, 1
        %s353 = smul.u32 %s26, 3
        %s354 = sadd.s32 %s353, %s27
        %s355 = smul.u32 32, %s354
        %p356 = scmp.lt.s32.totalorder %s355, 95
        %s357 = scalar_select %p356, %s355, 95
        %s358 = smul.addr %s357, 8
        %s359 = scalar_lea.vmem %s0, %s358
        %p360 = pneg %p59
        %p361 = pneg %p56
        %s362 = smul.u32 %s26, 3
        %s363 = sadd.s32 %s362, %s27
        %s364 = smul.u32 2, %s363
        %p365 = scmp.lt.s32.totalorder %s364, 5
        %s366 = scalar_select %p365, %s364, 5
        %s367 = scalar_lea.vmem %s1, %s366
        %p368 = pneg %p89
        %p369 = pneg %p86
        %p370 = pneg %p110
        %p371 = pneg %p107
        %p372 = pneg %p131
        %p373 = pneg %p128
        %p374 = pneg %p152
        %p375 = pneg %p149
        %p376 = pneg %p173
        %p377 = pneg %p170
        %p378 = pneg %p194
        %p379 = pneg %p191
        %p380 = pneg %p215
        %p381 = pneg %p212
        %p382 = pneg %p236
        %p383 = pneg %p233
        %p384 = pneg %p257
        %p385 = pneg %p254
        %p386 = pneg %p278
        %p387 = pneg %p275
        %s388 = smul.u32 %s26, 3
        %s389 = sadd.s32 %s388, %s27
        %s390 = smul.u32 32, %s389
        %p391 = scmp.lt.s32.totalorder %s390, 95
        %s392 = scalar_select %p391, %s390, 95
        %s393 = smul.addr %s392, 8
        %s394 = scalar_lea.vmem %s0, %s393
        %s395 = smul.u32 %s26, 3
        %s396 = sadd.s32 %s395, %s27
        %s397 = smul.u32 32, %s396
        %s398 = smul.u32 %s26, 3
        %s399 = sadd.s32 %s398, %s27
        %s400 = smul.u32 2, %s399
        %p401 = scmp.lt.s32.totalorder %s400, 5
        %s402 = scalar_select %p401, %s400, 5
        %s403 = scalar_lea.vmem %s1, %s402
        %s404 = smul.u32 %s26, 3
        %s405 = sadd.s32 %s404, %s27
        %s406 = smul.u32 2, %s405
        %p408 = scmp.eq.s32.totalorder %s27, 0
        // Predicated region
        $region61: #{tpu_custom_call.1} parent=59 // pred_check
          %p409 = pneg %p408
        $region62: #{tpu_custom_call.1} parent=59 // pred_check_branch
          %411 = sbr.rel (%p409) target = $region64
        $region63: #{tpu_custom_call.1} parent=59 // pred_region
          %vm412 = vcmask 256000
          %413 = vst.msk [vmem:[#allocation2] sm:$0x7] %vm412, 0.0
        $region64: #{tpu_custom_call.1} parent=59 // pred_fallthru
          _
        %v414 = vld [vmem:[%s394] sm:$0xff]
        %v415 = vld [vmem:[%s394 + $0x8] sm:$0xff]
        %v416 = vld [vmem:[%s394 + $0x10] sm:$0xff]
        %v417 = vld [vmem:[%s394 + $0x18] sm:$0xff]
        %v418 = vld [vmem:[%s394 + $0x20] sm:$0xff]
        %v419 = vld [vmem:[%s394 + $0x28] sm:$0xff]
        %v420 = vld [vmem:[%s394 + $0x30] sm:$0xff]
        %v421 = vld [vmem:[%s394 + $0x38] sm:$0xff]
        %v422 = vld [vmem:[%s394 + $0x40] sm:$0xff]
        %v423 = vld [vmem:[%s394 + $0x48] sm:$0xff]
        %v424 = vld [vmem:[%s394 + $0x50] sm:$0xff]
        %v425 = vld [vmem:[%s394 + $0x58] sm:$0xff]
        %v426 = vld [vmem:[%s394 + $0x60] sm:$0xff]
        %v427 = vld [vmem:[%s394 + $0x68] sm:$0xff]
        %v428 = vld [vmem:[%s394 + $0x70] sm:$0xff]
        %v429 = vld [vmem:[%s394 + $0x78] sm:$0xff]
        %v430 = vld [vmem:[%s394 + $0x80] sm:$0xff]
        %v431 = vld [vmem:[%s394 + $0x88] sm:$0xff]
        %v432 = vld [vmem:[%s394 + $0x90] sm:$0xff]
        %v433 = vld [vmem:[%s394 + $0x98] sm:$0xff]
        %v434 = vld [vmem:[%s394 + $0xa0] sm:$0xff]
        %v435 = vld [vmem:[%s394 + $0xa8] sm:$0xff]
        %v436 = vld [vmem:[%s394 + $0xb0] sm:$0xff]
        %v437 = vld [vmem:[%s394 + $0xb8] sm:$0xff]
        %v438 = vld [vmem:[%s394 + $0xc0] sm:$0xff]
        %v439 = vld [vmem:[%s394 + $0xc8] sm:$0xff]
        %v440 = vld [vmem:[%s394 + $0xd0] sm:$0xff]
        %v441 = vld [vmem:[%s394 + $0xd8] sm:$0xff]
        %v442 = vld [vmem:[%s394 + $0xe0] sm:$0xff]
        %v443 = vld [vmem:[%s394 + $0xe8] sm:$0xff]
        %v444 = vld [vmem:[%s394 + $0xf0] sm:$0xff]
        %v445 = vld [vmem:[%s394 + $0xf8] sm:$0xff]
        %v446 = vld [vmem:[%s2] sm:$0xf]
        %v447 = vld [vmem:[%s3] sm:$0x1]
        %v449 = vlaneseq
        %v450 = vshrl.u32 %v449, 7
        %v451 = vsub.s32 0, %v450
        %v452 = vrot.slane %v447, %v451
        %455 = vset.pattern.permute.xlu0 0
        %456 = vperm.xlu0 %455, %v414
        %v457 = vpop.permute.xlu0 %456
        %460 = vset.pattern.permute.xlu0 0
        %461 = vperm.xlu0 %460, %v415
        %v462 = vpop.permute.xlu0 %461
        %465 = vset.pattern.permute.xlu0 0
        %466 = vperm.xlu0 %465, %v416
        %v467 = vpop.permute.xlu0 %466
        %470 = vset.pattern.permute.xlu0 0
        %471 = vperm.xlu0 %470, %v417
        %v472 = vpop.permute.xlu0 %471
        %475 = vset.pattern.permute.xlu0 0
        %476 = vperm.xlu0 %475, %v418
        %v477 = vpop.permute.xlu0 %476
        %480 = vset.pattern.permute.xlu0 0
        %481 = vperm.xlu0 %480, %v419
        %v482 = vpop.permute.xlu0 %481
        %485 = vset.pattern.permute.xlu0 0
        %486 = vperm.xlu0 %485, %v420
        %v487 = vpop.permute.xlu0 %486
        %490 = vset.pattern.permute.xlu0 0
        %491 = vperm.xlu0 %490, %v421
        %v492 = vpop.permute.xlu0 %491
        %495 = vset.pattern.permute.xlu0 0
        %496 = vperm.xlu0 %495, %v422
        %v497 = vpop.permute.xlu0 %496
        %500 = vset.pattern.permute.xlu0 0
        %501 = vperm.xlu0 %500, %v423
        %v502 = vpop.permute.xlu0 %501
        %505 = vset.pattern.permute.xlu0 0
        %506 = vperm.xlu0 %505, %v424
        %v507 = vpop.permute.xlu0 %506
        %510 = vset.pattern.permute.xlu0 0
        %511 = vperm.xlu0 %510, %v425
        %v512 = vpop.permute.xlu0 %511
        %515 = vset.pattern.permute.xlu0 0
        %516 = vperm.xlu0 %515, %v426
        %v517 = vpop.permute.xlu0 %516
        %520 = vset.pattern.permute.xlu0 0
        %521 = vperm.xlu0 %520, %v427
        %v522 = vpop.permute.xlu0 %521
        %525 = vset.pattern.permute.xlu0 0
        %526 = vperm.xlu0 %525, %v428
        %v527 = vpop.permute.xlu0 %526
        %530 = vset.pattern.permute.xlu0 0
        %531 = vperm.xlu0 %530, %v429
        %v532 = vpop.permute.xlu0 %531
        %535 = vset.pattern.permute.xlu0 0
        %536 = vperm.xlu0 %535, %v430
        %v537 = vpop.permute.xlu0 %536
        %540 = vset.pattern.permute.xlu0 0
        %541 = vperm.xlu0 %540, %v431
        %v542 = vpop.permute.xlu0 %541
        %545 = vset.pattern.permute.xlu0 0
        %546 = vperm.xlu0 %545, %v432
        %v547 = vpop.permute.xlu0 %546
        %550 = vset.pattern.permute.xlu0 0
        %551 = vperm.xlu0 %550, %v433
        %v552 = vpop.permute.xlu0 %551
        %555 = vset.pattern.permute.xlu0 0
        %556 = vperm.xlu0 %555, %v434
        %v557 = vpop.permute.xlu0 %556
        %560 = vset.pattern.permute.xlu0 0
        %561 = vperm.xlu0 %560, %v435
        %v562 = vpop.permute.xlu0 %561
        %565 = vset.pattern.permute.xlu0 0
        %566 = vperm.xlu0 %565, %v436
        %v567 = vpop.permute.xlu0 %566
        %570 = vset.pattern.permute.xlu0 0
        %571 = vperm.xlu0 %570, %v437
        %v572 = vpop.permute.xlu0 %571
        %575 = vset.pattern.permute.xlu0 0
        %576 = vperm.xlu0 %575, %v438
        %v577 = vpop.permute.xlu0 %576
        %580 = vset.pattern.permute.xlu0 0
        %581 = vperm.xlu0 %580, %v439
        %v582 = vpop.permute.xlu0 %581
        %585 = vset.pattern.permute.xlu0 0
        %586 = vperm.xlu0 %585, %v440
        %v587 = vpop.permute.xlu0 %586
        %590 = vset.pattern.permute.xlu0 0
        %591 = vperm.xlu0 %590, %v441
        %v592 = vpop.permute.xlu0 %591
        %595 = vset.pattern.permute.xlu0 0
        %596 = vperm.xlu0 %595, %v442
        %v597 = vpop.permute.xlu0 %596
        %600 = vset.pattern.permute.xlu0 0
        %601 = vperm.xlu0 %600, %v443
        %v602 = vpop.permute.xlu0 %601
        %605 = vset.pattern.permute.xlu0 0
        %606 = vperm.xlu0 %605, %v444
        %v607 = vpop.permute.xlu0 %606
        %610 = vset.pattern.permute.xlu0 0
        %611 = vperm.xlu0 %610, %v445
        %v612 = vpop.permute.xlu0 %611
        %v614 = vlaneseq
        %v615 = vshrl.u32 %v614, 7
        %v616 = vsub.s32 0, %v615
        %v617 = vrot.slane %v446, %v616
        %v618 = vmul.f32 %v457, %v617
        %v619 = vmul.f32 %v462, %v617
        %v620 = vmul.f32 %v467, %v617
        %v621 = vmul.f32 %v472, %v617
        %v622 = vmul.f32 %v477, %v617
        %v623 = vmul.f32 %v482, %v617
        %v624 = vmul.f32 %v487, %v617
        %v625 = vmul.f32 %v492, %v617
        %v626 = vmul.f32 %v497, %v617
        %v627 = vmul.f32 %v502, %v617
        %v628 = vmul.f32 %v507, %v617
        %v629 = vmul.f32 %v512, %v617
        %v630 = vmul.f32 %v517, %v617
        %v631 = vmul.f32 %v522, %v617
        %v632 = vmul.f32 %v527, %v617
        %v633 = vmul.f32 %v532, %v617
        %v634 = vmul.f32 %v537, %v617
        %v635 = vmul.f32 %v542, %v617
        %v636 = vmul.f32 %v547, %v617
        %v637 = vmul.f32 %v552, %v617
        %v638 = vmul.f32 %v557, %v617
        %v639 = vmul.f32 %v562, %v617
        %v640 = vmul.f32 %v567, %v617
        %v641 = vmul.f32 %v572, %v617
        %v642 = vmul.f32 %v577, %v617
        %v643 = vmul.f32 %v582, %v617
        %v644 = vmul.f32 %v587, %v617
        %v645 = vmul.f32 %v592, %v617
        %v646 = vmul.f32 %v597, %v617
        %v647 = vmul.f32 %v602, %v617
        %v648 = vmul.f32 %v607, %v617
        %v649 = vmul.f32 %v612, %v617
        %v650 = vadd.f32 %v452, %v618
        %v651 = vadd.f32 %v452, %v619
        %v652 = vadd.f32 %v452, %v620
        %v653 = vadd.f32 %v452, %v621
        %v654 = vadd.f32 %v452, %v622
        %v655 = vadd.f32 %v452, %v623
        %v656 = vadd.f32 %v452, %v624
        %v657 = vadd.f32 %v452, %v625
        %v658 = vadd.f32 %v452, %v626
        %v659 = vadd.f32 %v452, %v627
        %v660 = vadd.f32 %v452, %v628
        %v661 = vadd.f32 %v452, %v629
        %v662 = vadd.f32 %v452, %v630
        %v663 = vadd.f32 %v452, %v631
        %v664 = vadd.f32 %v452, %v632
        %v665 = vadd.f32 %v452, %v633
        %v666 = vadd.f32 %v452, %v634
        %v667 = vadd.f32 %v452, %v635
        %v668 = vadd.f32 %v452, %v636
        %v669 = vadd.f32 %v452, %v637
        %v670 = vadd.f32 %v452, %v638
        %v671 = vadd.f32 %v452, %v639
        %v672 = vadd.f32 %v452, %v640
        %v673 = vadd.f32 %v452, %v641
        %v674 = vadd.f32 %v452, %v642
        %v675 = vadd.f32 %v452, %v643
        %v676 = vadd.f32 %v452, %v644
        %v677 = vadd.f32 %v452, %v645
        %v678 = vadd.f32 %v452, %v646
        %v679 = vadd.f32 %v452, %v647
        %v680 = vadd.f32 %v452, %v648
        %v681 = vadd.f32 %v452, %v649
        %682 = vset.pattern.permute.xlu0 1
        %683 = vperm.xlu0 %682, %v414
        %v684 = vpop.permute.xlu0 %683
        %686 = vset.pattern.permute.xlu0 1
        %687 = vperm.xlu0 %686, %v415
        %v688 = vpop.permute.xlu0 %687
        %690 = vset.pattern.permute.xlu0 1
        %691 = vperm.xlu0 %690, %v416
        %v692 = vpop.permute.xlu0 %691
        %694 = vset.pattern.permute.xlu0 1
        %695 = vperm.xlu0 %694, %v417
        %v696 = vpop.permute.xlu0 %695
        %698 = vset.pattern.permute.xlu0 1
        %699 = vperm.xlu0 %698, %v418
        %v700 = vpop.permute.xlu0 %699
        %702 = vset.pattern.permute.xlu0 1
        %703 = vperm.xlu0 %702, %v419
        %v704 = vpop.permute.xlu0 %703
        %706 = vset.pattern.permute.xlu0 1
        %707 = vperm.xlu0 %706, %v420
        %v708 = vpop.permute.xlu0 %707
        %710 = vset.pattern.permute.xlu0 1
        %711 = vperm.xlu0 %710, %v421
        %v712 = vpop.permute.xlu0 %711
        %714 = vset.pattern.permute.xlu0 1
        %715 = vperm.xlu0 %714, %v422
        %v716 = vpop.permute.xlu0 %715
        %718 = vset.pattern.permute.xlu0 1
        %719 = vperm.xlu0 %718, %v423
        %v720 = vpop.permute.xlu0 %719
        %722 = vset.pattern.permute.xlu0 1
        %723 = vperm.xlu0 %722, %v424
        %v724 = vpop.permute.xlu0 %723
        %726 = vset.pattern.permute.xlu0 1
        %727 = vperm.xlu0 %726, %v425
        %v728 = vpop.permute.xlu0 %727
        %730 = vset.pattern.permute.xlu0 1
        %731 = vperm.xlu0 %730, %v426
        %v732 = vpop.permute.xlu0 %731
        %734 = vset.pattern.permute.xlu0 1
        %735 = vperm.xlu0 %734, %v427
        %v736 = vpop.permute.xlu0 %735
        %738 = vset.pattern.permute.xlu0 1
        %739 = vperm.xlu0 %738, %v428
        %v740 = vpop.permute.xlu0 %739
        %742 = vset.pattern.permute.xlu0 1
        %743 = vperm.xlu0 %742, %v429
        %v744 = vpop.permute.xlu0 %743
        %746 = vset.pattern.permute.xlu0 1
        %747 = vperm.xlu0 %746, %v430
        %v748 = vpop.permute.xlu0 %747
        %750 = vset.pattern.permute.xlu0 1
        %751 = vperm.xlu0 %750, %v431
        %v752 = vpop.permute.xlu0 %751
        %754 = vset.pattern.permute.xlu0 1
        %755 = vperm.xlu0 %754, %v432
        %v756 = vpop.permute.xlu0 %755
        %758 = vset.pattern.permute.xlu0 1
        %759 = vperm.xlu0 %758, %v433
        %v760 = vpop.permute.xlu0 %759
        %762 = vset.pattern.permute.xlu0 1
        %763 = vperm.xlu0 %762, %v434
        %v764 = vpop.permute.xlu0 %763
        %766 = vset.pattern.permute.xlu0 1
        %767 = vperm.xlu0 %766, %v435
        %v768 = vpop.permute.xlu0 %767
        %770 = vset.pattern.permute.xlu0 1
        %771 = vperm.xlu0 %770, %v436
        %v772 = vpop.permute.xlu0 %771
        %774 = vset.pattern.permute.xlu0 1
        %775 = vperm.xlu0 %774, %v437
        %v776 = vpop.permute.xlu0 %775
        %778 = vset.pattern.permute.xlu0 1
        %779 = vperm.xlu0 %778, %v438
        %v780 = vpop.permute.xlu0 %779
        %782 = vset.pattern.permute.xlu0 1
        %783 = vperm.xlu0 %782, %v439
        %v784 = vpop.permute.xlu0 %783
        %786 = vset.pattern.permute.xlu0 1
        %787 = vperm.xlu0 %786, %v440
        %v788 = vpop.permute.xlu0 %787
        %790 = vset.pattern.permute.xlu0 1
        %791 = vperm.xlu0 %790, %v441
        %v792 = vpop.permute.xlu0 %791
        %794 = vset.pattern.permute.xlu0 1
        %795 = vperm.xlu0 %794, %v442
        %v796 = vpop.permute.xlu0 %795
        %798 = vset.pattern.permute.xlu0 1
        %799 = vperm.xlu0 %798, %v443
        %v800 = vpop.permute.xlu0 %799
        %802 = vset.pattern.permute.xlu0 1
        %803 = vperm.xlu0 %802, %v444
        %v804 = vpop.permute.xlu0 %803
        %806 = vset.pattern.permute.xlu0 1
        %807 = vperm.xlu0 %806, %v445
        %v808 = vpop.permute.xlu0 %807
        %v810 = vlaneseq
        %v811 = vshrl.u32 %v810, 7
        %v812 = vsub.s32 1, %v811
        %v813 = vrot.slane %v446, %v812
        %v814 = vmul.f32 %v684, %v813
        %v815 = vmul.f32 %v688, %v813
        %v816 = vmul.f32 %v692, %v813
        %v817 = vmul.f32 %v696, %v813
        %v818 = vmul.f32 %v700, %v813
        %v819 = vmul.f32 %v704, %v813
        %v820 = vmul.f32 %v708, %v813
        %v821 = vmul.f32 %v712, %v813
        %v822 = vmul.f32 %v716, %v813
        %v823 = vmul.f32 %v720, %v813
        %v824 = vmul.f32 %v724, %v813
        %v825 = vmul.f32 %v728, %v813
        %v826 = vmul.f32 %v732, %v813
        %v827 = vmul.f32 %v736, %v813
        %v828 = vmul.f32 %v740, %v813
        %v829 = vmul.f32 %v744, %v813
        %v830 = vmul.f32 %v748, %v813
        %v831 = vmul.f32 %v752, %v813
        %v832 = vmul.f32 %v756, %v813
        %v833 = vmul.f32 %v760, %v813
        %v834 = vmul.f32 %v764, %v813
        %v835 = vmul.f32 %v768, %v813
        %v836 = vmul.f32 %v772, %v813
        %v837 = vmul.f32 %v776, %v813
        %v838 = vmul.f32 %v780, %v813
        %v839 = vmul.f32 %v784, %v813
        %v840 = vmul.f32 %v788, %v813
        %v841 = vmul.f32 %v792, %v813
        %v842 = vmul.f32 %v796, %v813
        %v843 = vmul.f32 %v800, %v813
        %v844 = vmul.f32 %v804, %v813
        %v845 = vmul.f32 %v808, %v813
        %v846 = vadd.f32 %v650, %v814
        %v847 = vadd.f32 %v651, %v815
        %v848 = vadd.f32 %v652, %v816
        %v849 = vadd.f32 %v653, %v817
        %v850 = vadd.f32 %v654, %v818
        %v851 = vadd.f32 %v655, %v819
        %v852 = vadd.f32 %v656, %v820
        %v853 = vadd.f32 %v657, %v821
        %v854 = vadd.f32 %v658, %v822
        %v855 = vadd.f32 %v659, %v823
        %v856 = vadd.f32 %v660, %v824
        %v857 = vadd.f32 %v661, %v825
        %v858 = vadd.f32 %v662, %v826
        %v859 = vadd.f32 %v663, %v827
        %v860 = vadd.f32 %v664, %v828
        %v861 = vadd.f32 %v665, %v829
        %v862 = vadd.f32 %v666, %v830
        %v863 = vadd.f32 %v667, %v831
        %v864 = vadd.f32 %v668, %v832
        %v865 = vadd.f32 %v669, %v833
        %v866 = vadd.f32 %v670, %v834
        %v867 = vadd.f32 %v671, %v835
        %v868 = vadd.f32 %v672, %v836
        %v869 = vadd.f32 %v673, %v837
        %v870 = vadd.f32 %v674, %v838
        %v871 = vadd.f32 %v675, %v839
        %v872 = vadd.f32 %v676, %v840
        %v873 = vadd.f32 %v677, %v841
        %v874 = vadd.f32 %v678, %v842
        %v875 = vadd.f32 %v679, %v843
        %v876 = vadd.f32 %v680, %v844
        %v877 = vadd.f32 %v681, %v845
        %878 = vset.pattern.permute.xlu0 2
        %879 = vperm.xlu0 %878, %v414
        %v880 = vpop.permute.xlu0 %879
        %882 = vset.pattern.permute.xlu0 2
        %883 = vperm.xlu0 %882, %v415
        %v884 = vpop.permute.xlu0 %883
        %886 = vset.pattern.permute.xlu0 2
        %887 = vperm.xlu0 %886, %v416
        %v888 = vpop.permute.xlu0 %887
        %890 = vset.pattern.permute.xlu0 2
        %891 = vperm.xlu0 %890, %v417
        %v892 = vpop.permute.xlu0 %891
        %894 = vset.pattern.permute.xlu0 2
        %895 = vperm.xlu0 %894, %v418
        %v896 = vpop.permute.xlu0 %895
        %898 = vset.pattern.permute.xlu0 2
        %899 = vperm.xlu0 %898, %v419
        %v900 = vpop.permute.xlu0 %899
        %902 = vset.pattern.permute.xlu0 2
        %903 = vperm.xlu0 %902, %v420
        %v904 = vpop.permute.xlu0 %903
        %906 = vset.pattern.permute.xlu0 2
        %907 = vperm.xlu0 %906, %v421
        %v908 = vpop.permute.xlu0 %907
        %910 = vset.pattern.permute.xlu0 2
        %911 = vperm.xlu0 %910, %v422
        %v912 = vpop.permute.xlu0 %911
        %914 = vset.pattern.permute.xlu0 2
        %915 = vperm.xlu0 %914, %v423
        %v916 = vpop.permute.xlu0 %915
        %918 = vset.pattern.permute.xlu0 2
        %919 = vperm.xlu0 %918, %v424
        %v920 = vpop.permute.xlu0 %919
        %922 = vset.pattern.permute.xlu0 2
        %923 = vperm.xlu0 %922, %v425
        %v924 = vpop.permute.xlu0 %923
        %926 = vset.pattern.permute.xlu0 2
        %927 = vperm.xlu0 %926, %v426
        %v928 = vpop.permute.xlu0 %927
        %930 = vset.pattern.permute.xlu0 2
        %931 = vperm.xlu0 %930, %v427
        %v932 = vpop.permute.xlu0 %931
        %934 = vset.pattern.permute.xlu0 2
        %935 = vperm.xlu0 %934, %v428
        %v936 = vpop.permute.xlu0 %935
        %938 = vset.pattern.permute.xlu0 2
        %939 = vperm.xlu0 %938, %v429
        %v940 = vpop.permute.xlu0 %939
        %942 = vset.pattern.permute.xlu0 2
        %943 = vperm.xlu0 %942, %v430
        %v944 = vpop.permute.xlu0 %943
        %946 = vset.pattern.permute.xlu0 2
        %947 = vperm.xlu0 %946, %v431
        %v948 = vpop.permute.xlu0 %947
        %950 = vset.pattern.permute.xlu0 2
        %951 = vperm.xlu0 %950, %v432
        %v952 = vpop.permute.xlu0 %951
        %954 = vset.pattern.permute.xlu0 2
        %955 = vperm.xlu0 %954, %v433
        %v956 = vpop.permute.xlu0 %955
        %958 = vset.pattern.permute.xlu0 2
        %959 = vperm.xlu0 %958, %v434
        %v960 = vpop.permute.xlu0 %959
        %962 = vset.pattern.permute.xlu0 2
        %963 = vperm.xlu0 %962, %v435
        %v964 = vpop.permute.xlu0 %963
        %966 = vset.pattern.permute.xlu0 2
        %967 = vperm.xlu0 %966, %v436
        %v968 = vpop.permute.xlu0 %967
        %970 = vset.pattern.permute.xlu0 2
        %971 = vperm.xlu0 %970, %v437
        %v972 = vpop.permute.xlu0 %971
        %974 = vset.pattern.permute.xlu0 2
        %975 = vperm.xlu0 %974, %v438
        %v976 = vpop.permute.xlu0 %975
        %978 = vset.pattern.permute.xlu0 2
        %979 = vperm.xlu0 %978, %v439
        %v980 = vpop.permute.xlu0 %979
        %982 = vset.pattern.permute.xlu0 2
        %983 = vperm.xlu0 %982, %v440
        %v984 = vpop.permute.xlu0 %983
        %986 = vset.pattern.permute.xlu0 2
        %987 = vperm.xlu0 %986, %v441
        %v988 = vpop.permute.xlu0 %987
        %990 = vset.pattern.permute.xlu0 2
        %991 = vperm.xlu0 %990, %v442
        %v992 = vpop.permute.xlu0 %991
        %994 = vset.pattern.permute.xlu0 2
        %995 = vperm.xlu0 %994, %v443
        %v996 = vpop.permute.xlu0 %995
        %998 = vset.pattern.permute.xlu0 2
        %999 = vperm.xlu0 %998, %v444
        %v1000 = vpop.permute.xlu0 %999
        %1002 = vset.pattern.permute.xlu0 2
        %1003 = vperm.xlu0 %1002, %v445
        %v1004 = vpop.permute.xlu0 %1003
        %v1006 = vlaneseq
        %v1007 = vshrl.u32 %v1006, 7
        %v1008 = vsub.s32 2, %v1007
        %v1009 = vrot.slane %v446, %v1008
        %v1010 = vmul.f32 %v880, %v1009
        %v1011 = vmul.f32 %v884, %v1009
        %v1012 = vmul.f32 %v888, %v1009
        %v1013 = vmul.f32 %v892, %v1009
        %v1014 = vmul.f32 %v896, %v1009
        %v1015 = vmul.f32 %v900, %v1009
        %v1016 = vmul.f32 %v904, %v1009
        %v1017 = vmul.f32 %v908, %v1009
        %v1018 = vmul.f32 %v912, %v1009
        %v1019 = vmul.f32 %v916, %v1009
        %v1020 = vmul.f32 %v920, %v1009
        %v1021 = vmul.f32 %v924, %v1009
        %v1022 = vmul.f32 %v928, %v1009
        %v1023 = vmul.f32 %v932, %v1009
        %v1024 = vmul.f32 %v936, %v1009
        %v1025 = vmul.f32 %v940, %v1009
        %v1026 = vmul.f32 %v944, %v1009
        %v1027 = vmul.f32 %v948, %v1009
        %v1028 = vmul.f32 %v952, %v1009
        %v1029 = vmul.f32 %v956, %v1009
        %v1030 = vmul.f32 %v960, %v1009
        %v1031 = vmul.f32 %v964, %v1009
        %v1032 = vmul.f32 %v968, %v1009
        %v1033 = vmul.f32 %v972, %v1009
        %v1034 = vmul.f32 %v976, %v1009
        %v1035 = vmul.f32 %v980, %v1009
        %v1036 = vmul.f32 %v984, %v1009
        %v1037 = vmul.f32 %v988, %v1009
        %v1038 = vmul.f32 %v992, %v1009
        %v1039 = vmul.f32 %v996, %v1009
        %v1040 = vmul.f32 %v1000, %v1009
        %v1041 = vmul.f32 %v1004, %v1009
        %v1042 = vadd.f32 %v846, %v1010
        %v1043 = vadd.f32 %v847, %v1011
        %v1044 = vadd.f32 %v848, %v1012
        %v1045 = vadd.f32 %v849, %v1013
        %v1046 = vadd.f32 %v850, %v1014
        %v1047 = vadd.f32 %v851, %v1015
        %v1048 = vadd.f32 %v852, %v1016
        %v1049 = vadd.f32 %v853, %v1017
        %v1050 = vadd.f32 %v854, %v1018
        %v1051 = vadd.f32 %v855, %v1019
        %v1052 = vadd.f32 %v856, %v1020
        %v1053 = vadd.f32 %v857, %v1021
        %v1054 = vadd.f32 %v858, %v1022
        %v1055 = vadd.f32 %v859, %v1023
        %v1056 = vadd.f32 %v860, %v1024
        %v1057 = vadd.f32 %v861, %v1025
        %v1058 = vadd.f32 %v862, %v1026
        %v1059 = vadd.f32 %v863, %v1027
        %v1060 = vadd.f32 %v864, %v1028
        %v1061 = vadd.f32 %v865, %v1029
        %v1062 = vadd.f32 %v866, %v1030
        %v1063 = vadd.f32 %v867, %v1031
        %v1064 = vadd.f32 %v868, %v1032
        %v1065 = vadd.f32 %v869, %v1033
        %v1066 = vadd.f32 %v870, %v1034
        %v1067 = vadd.f32 %v871, %v1035
        %v1068 = vadd.f32 %v872, %v1036
        %v1069 = vadd.f32 %v873, %v1037
        %v1070 = vadd.f32 %v874, %v1038
        %v1071 = vadd.f32 %v875, %v1039
        %v1072 = vadd.f32 %v876, %v1040
        %v1073 = vadd.f32 %v877, %v1041
        %1074 = vset.pattern.permute.xlu0 3
        %1075 = vperm.xlu0 %1074, %v414
        %v1076 = vpop.permute.xlu0 %1075
        %1078 = vset.pattern.permute.xlu0 3
        %1079 = vperm.xlu0 %1078, %v415
        %v1080 = vpop.permute.xlu0 %1079
        %1082 = vset.pattern.permute.xlu0 3
        %1083 = vperm.xlu0 %1082, %v416
        %v1084 = vpop.permute.xlu0 %1083
        %1086 = vset.pattern.permute.xlu0 3
        %1087 = vperm.xlu0 %1086, %v417
        %v1088 = vpop.permute.xlu0 %1087
        %1090 = vset.pattern.permute.xlu0 3
        %1091 = vperm.xlu0 %1090, %v418
        %v1092 = vpop.permute.xlu0 %1091
        %1094 = vset.pattern.permute.xlu0 3
        %1095 = vperm.xlu0 %1094, %v419
        %v1096 = vpop.permute.xlu0 %1095
        %1098 = vset.pattern.permute.xlu0 3
        %1099 = vperm.xlu0 %1098, %v420
        %v1100 = vpop.permute.xlu0 %1099
        %1102 = vset.pattern.permute.xlu0 3
        %1103 = vperm.xlu0 %1102, %v421
        %v1104 = vpop.permute.xlu0 %1103
        %1106 = vset.pattern.permute.xlu0 3
        %1107 = vperm.xlu0 %1106, %v422
        %v1108 = vpop.permute.xlu0 %1107
        %1110 = vset.pattern.permute.xlu0 3
        %1111 = vperm.xlu0 %1110, %v423
        %v1112 = vpop.permute.xlu0 %1111
        %1114 = vset.pattern.permute.xlu0 3
        %1115 = vperm.xlu0 %1114, %v424
        %v1116 = vpop.permute.xlu0 %1115
        %1118 = vset.pattern.permute.xlu0 3
        %1119 = vperm.xlu0 %1118, %v425
        %v1120 = vpop.permute.xlu0 %1119
        %1122 = vset.pattern.permute.xlu0 3
        %1123 = vperm.xlu0 %1122, %v426
        %v1124 = vpop.permute.xlu0 %1123
        %1126 = vset.pattern.permute.xlu0 3
        %1127 = vperm.xlu0 %1126, %v427
        %v1128 = vpop.permute.xlu0 %1127
        %1130 = vset.pattern.permute.xlu0 3
        %1131 = vperm.xlu0 %1130, %v428
        %v1132 = vpop.permute.xlu0 %1131
        %1134 = vset.pattern.permute.xlu0 3
        %1135 = vperm.xlu0 %1134, %v429
        %v1136 = vpop.permute.xlu0 %1135
        %1138 = vset.pattern.permute.xlu0 3
        %1139 = vperm.xlu0 %1138, %v430
        %v1140 = vpop.permute.xlu0 %1139
        %1142 = vset.pattern.permute.xlu0 3
        %1143 = vperm.xlu0 %1142, %v431
        %v1144 = vpop.permute.xlu0 %1143
        %1146 = vset.pattern.permute.xlu0 3
        %1147 = vperm.xlu0 %1146, %v432
        %v1148 = vpop.permute.xlu0 %1147
        %1150 = vset.pattern.permute.xlu0 3
        %1151 = vperm.xlu0 %1150, %v433
        %v1152 = vpop.permute.xlu0 %1151
        %1154 = vset.pattern.permute.xlu0 3
        %1155 = vperm.xlu0 %1154, %v434
        %v1156 = vpop.permute.xlu0 %1155
        %1158 = vset.pattern.permute.xlu0 3
        %1159 = vperm.xlu0 %1158, %v435
        %v1160 = vpop.permute.xlu0 %1159
        %1162 = vset.pattern.permute.xlu0 3
        %1163 = vperm.xlu0 %1162, %v436
        %v1164 = vpop.permute.xlu0 %1163
        %1166 = vset.pattern.permute.xlu0 3
        %1167 = vperm.xlu0 %1166, %v437
        %v1168 = vpop.permute.xlu0 %1167
        %1170 = vset.pattern.permute.xlu0 3
        %1171 = vperm.xlu0 %1170, %v438
        %v1172 = vpop.permute.xlu0 %1171
        %1174 = vset.pattern.permute.xlu0 3
        %1175 = vperm.xlu0 %1174, %v439
        %v1176 = vpop.permute.xlu0 %1175
        %1178 = vset.pattern.permute.xlu0 3
        %1179 = vperm.xlu0 %1178, %v440
        %v1180 = vpop.permute.xlu0 %1179
        %1182 = vset.pattern.permute.xlu0 3
        %1183 = vperm.xlu0 %1182, %v441
        %v1184 = vpop.permute.xlu0 %1183
        %1186 = vset.pattern.permute.xlu0 3
        %1187 = vperm.xlu0 %1186, %v442
        %v1188 = vpop.permute.xlu0 %1187
        %1190 = vset.pattern.permute.xlu0 3
        %1191 = vperm.xlu0 %1190, %v443
        %v1192 = vpop.permute.xlu0 %1191
        %1194 = vset.pattern.permute.xlu0 3
        %1195 = vperm.xlu0 %1194, %v444
        %v1196 = vpop.permute.xlu0 %1195
        %1198 = vset.pattern.permute.xlu0 3
        %1199 = vperm.xlu0 %1198, %v445
        %v1200 = vpop.permute.xlu0 %1199
        %v1202 = vlaneseq
        %v1203 = vshrl.u32 %v1202, 7
        %v1204 = vsub.s32 3, %v1203
        %v1205 = vrot.slane %v446, %v1204
        %v1206 = vmul.f32 %v1076, %v1205
        %v1207 = vmul.f32 %v1080, %v1205
        %v1208 = vmul.f32 %v1084, %v1205
        %v1209 = vmul.f32 %v1088, %v1205
        %v1210 = vmul.f32 %v1092, %v1205
        %v1211 = vmul.f32 %v1096, %v1205
        %v1212 = vmul.f32 %v1100, %v1205
        %v1213 = vmul.f32 %v1104, %v1205
        %v1214 = vmul.f32 %v1108, %v1205
        %v1215 = vmul.f32 %v1112, %v1205
        %v1216 = vmul.f32 %v1116, %v1205
        %v1217 = vmul.f32 %v1120, %v1205
        %v1218 = vmul.f32 %v1124, %v1205
        %v1219 = vmul.f32 %v1128, %v1205
        %v1220 = vmul.f32 %v1132, %v1205
        %v1221 = vmul.f32 %v1136, %v1205
        %v1222 = vmul.f32 %v1140, %v1205
        %v1223 = vmul.f32 %v1144, %v1205
        %v1224 = vmul.f32 %v1148, %v1205
        %v1225 = vmul.f32 %v1152, %v1205
        %v1226 = vmul.f32 %v1156, %v1205
        %v1227 = vmul.f32 %v1160, %v1205
        %v1228 = vmul.f32 %v1164, %v1205
        %v1229 = vmul.f32 %v1168, %v1205
        %v1230 = vmul.f32 %v1172, %v1205
        %v1231 = vmul.f32 %v1176, %v1205
        %v1232 = vmul.f32 %v1180, %v1205
        %v1233 = vmul.f32 %v1184, %v1205
        %v1234 = vmul.f32 %v1188, %v1205
        %v1235 = vmul.f32 %v1192, %v1205
        %v1236 = vmul.f32 %v1196, %v1205
        %v1237 = vmul.f32 %v1200, %v1205
        %v1238 = vadd.f32 %v1042, %v1206
        %v1239 = vadd.f32 %v1043, %v1207
        %v1240 = vadd.f32 %v1044, %v1208
        %v1241 = vadd.f32 %v1045, %v1209
        %v1242 = vadd.f32 %v1046, %v1210
        %v1243 = vadd.f32 %v1047, %v1211
        %v1244 = vadd.f32 %v1048, %v1212
        %v1245 = vadd.f32 %v1049, %v1213
        %v1246 = vadd.f32 %v1050, %v1214
        %v1247 = vadd.f32 %v1051, %v1215
        %v1248 = vadd.f32 %v1052, %v1216
        %v1249 = vadd.f32 %v1053, %v1217
        %v1250 = vadd.f32 %v1054, %v1218
        %v1251 = vadd.f32 %v1055, %v1219
        %v1252 = vadd.f32 %v1056, %v1220
        %v1253 = vadd.f32 %v1057, %v1221
        %v1254 = vadd.f32 %v1058, %v1222
        %v1255 = vadd.f32 %v1059, %v1223
        %v1256 = vadd.f32 %v1060, %v1224
        %v1257 = vadd.f32 %v1061, %v1225
        %v1258 = vadd.f32 %v1062, %v1226
        %v1259 = vadd.f32 %v1063, %v1227
        %v1260 = vadd.f32 %v1064, %v1228
        %v1261 = vadd.f32 %v1065, %v1229
        %v1262 = vadd.f32 %v1066, %v1230
        %v1263 = vadd.f32 %v1067, %v1231
        %v1264 = vadd.f32 %v1068, %v1232
        %v1265 = vadd.f32 %v1069, %v1233
        %v1266 = vadd.f32 %v1070, %v1234
        %v1267 = vadd.f32 %v1071, %v1235
        %v1268 = vadd.f32 %v1072, %v1236
        %v1269 = vadd.f32 %v1073, %v1237
        %v1270 = vtanh.pop %v1238
        %v1271 = vtanh.pop %v1239
        %v1272 = vtanh.pop %v1240
        %v1273 = vtanh.pop %v1241
        %v1274 = vtanh.pop %v1242
        %v1275 = vtanh.pop %v1243
        %v1276 = vtanh.pop %v1244
        %v1277 = vtanh.pop %v1245
        %v1278 = vtanh.pop %v1246
        %v1279 = vtanh.pop %v1247
        %v1280 = vtanh.pop %v1248
        %v1281 = vtanh.pop %v1249
        %v1282 = vtanh.pop %v1250
        %v1283 = vtanh.pop %v1251
        %v1284 = vtanh.pop %v1252
        %v1285 = vtanh.pop %v1253
        %v1286 = vtanh.pop %v1254
        %v1287 = vtanh.pop %v1255
        %v1288 = vtanh.pop %v1256
        %v1289 = vtanh.pop %v1257
        %v1290 = vtanh.pop %v1258
        %v1291 = vtanh.pop %v1259
        %v1292 = vtanh.pop %v1260
        %v1293 = vtanh.pop %v1261
        %v1294 = vtanh.pop %v1262
        %v1295 = vtanh.pop %v1263
        %v1296 = vtanh.pop %v1264
        %v1297 = vtanh.pop %v1265
        %v1298 = vtanh.pop %v1266
        %v1299 = vtanh.pop %v1267
        %v1300 = vtanh.pop %v1268
        %v1301 = vtanh.pop %v1269
        %v1302 = vpack.c.bf16 %v1271, %v1270
        %v1303 = vpack.c.bf16 %v1273, %v1272
        %v1304 = vpack.c.bf16 %v1275, %v1274
        %v1305 = vpack.c.bf16 %v1277, %v1276
        %v1306 = vpack.c.bf16 %v1279, %v1278
        %v1307 = vpack.c.bf16 %v1281, %v1280
        %v1308 = vpack.c.bf16 %v1283, %v1282
        %v1309 = vpack.c.bf16 %v1285, %v1284
        %v1310 = vpack.c.bf16 %v1287, %v1286
        %v1311 = vpack.c.bf16 %v1289, %v1288
        %v1312 = vpack.c.bf16 %v1291, %v1290
        %v1313 = vpack.c.bf16 %v1293, %v1292
        %v1314 = vpack.c.bf16 %v1295, %v1294
        %v1315 = vpack.c.bf16 %v1297, %v1296
        %v1316 = vpack.c.bf16 %v1299, %v1298
        %v1317 = vpack.c.bf16 %v1301, %v1300
        %v1318 = vld [vmem:[%s4] sm:$0xf]
        %v1319 = vld [vmem:[%s4 + $0x4] sm:$0xf]
        %v1320 = vld [vmem:[%s4 + $0x8] sm:$0xf]
        %v1321 = vld [vmem:[%s4 + $0xc] sm:$0xf]
        %v1322 = vld [vmem:[%s5] sm:$0x1]
        %v1324 = vlaneseq
        %v1325 = vshrl.u32 %v1324, 7
        %v1326 = vsub.s32 0, %v1325
        %v1327 = vrot.slane %v1322, %v1326
        %v1333 = vunpack.c.l.b16 %v1318
        %v1334 = vunpack.c.l.b16 %v1319
        %v1335 = vunpack.c.l.b16 %v1320
        %v1336 = vunpack.c.l.b16 %v1321
        %v1337 = vpack.c.b16 %v1334, %v1333
        %v1338 = vpack.c.b16 %v1336, %v1335
        %vm1341 = vcmask 261120
        %v1343 = vsel %vm1341, %v1302, 0
        %v1346 = vsel %vm1341, %v1303, 0
        %v1349 = vsel %vm1341, %v1304, 0
        %v1352 = vsel %vm1341, %v1305, 0
        %v1355 = vsel %vm1341, %v1306, 0
        %v1358 = vsel %vm1341, %v1307, 0
        %v1361 = vsel %vm1341, %v1308, 0
        %v1364 = vsel %vm1341, %v1309, 0
        %v1367 = vsel %vm1341, %v1310, 0
        %v1370 = vsel %vm1341, %v1311, 0
        %v1373 = vsel %vm1341, %v1312, 0
        %v1376 = vsel %vm1341, %v1313, 0
        %v1379 = vsel %vm1341, %v1314, 0
        %v1382 = vsel %vm1341, %v1315, 0
        %v1385 = vsel %vm1341, %v1316, 0
        %v1388 = vsel %vm1341, %v1317, 0
        %1390 = vmatprep.subr.bf16.mxu0 0
        %1391 = vmatpush1.bf16.msra.mxu0 %v1337
        %1392 = vmatprep.subr.bf16.mxu0 0
        %1393 = vmatpush1.bf16.msra.mxu0 %v1338
        %1394 = vmatprep.subr.bf16.mxu0 0
        %1395 = vmatpush1.bf16.msra.mxu0 0
        %1396 = vmatprep.subr.bf16.mxu0 0
        %1397 = vmatpush1.bf16.msra.mxu0 0
        %1398 = vmatprep.subr.bf16.mxu0 0
        %1399 = vmatpush1.bf16.msra.mxu0 0
        %1400 = vmatprep.subr.bf16.mxu0 0
        %1401 = vmatpush1.bf16.msra.mxu0 0
        %1402 = vmatprep.subr.bf16.mxu0 0
        %1403 = vmatpush1.bf16.msra.mxu0 0
        %1404 = vmatprep.subr.bf16.mxu0 0
        %1405 = vmatpush1.bf16.msra.mxu0 0
        %1406 = vmatprep.subr.bf16.mxu0 0
        %1407 = vmatpush1.bf16.msra.mxu0 0
        %1408 = vmatprep.subr.bf16.mxu0 0
        %1409 = vmatpush1.bf16.msra.mxu0 0
        %1410 = vmatprep.subr.bf16.mxu0 0
        %1411 = vmatpush1.bf16.msra.mxu0 0
        %1412 = vmatprep.subr.bf16.mxu0 0
        %1413 = vmatpush1.bf16.msra.mxu0 0
        %1414 = vmatprep.subr.bf16.mxu0 0
        %1415 = vmatpush1.bf16.msra.mxu0 0
        %1416 = vmatprep.subr.bf16.mxu0 0
        %1417 = vmatpush1.bf16.msra.mxu0 0
        %1418 = vmatprep.subr.bf16.mxu0 0
        %1419 = vmatpush1.bf16.msra.mxu0 0
        %1420 = vmatprep.subr.bf16.mxu0 0
        %1421 = vmatpush1.bf16.msra.mxu0 0
        %1422 = vmatprep.mubr.bf16.mxu0 0
        %1423 = vmatmul.mubr.bf16.gmra.mrb[0].mxu0 %v1343
        %v1424 = vpop.f32.mrb[0].mxu0
        %v1425 = vadd.f32 %v1327, %v1424
        %v1426 = vpop.f32.mrb[0].mxu0
        %v1427 = vpop.f32.mrb[0].mxu0
        %v1428 = vadd.f32 %v1327, %v1427
        %v1429 = vpop.f32.mrb[0].mxu0
        %1430 = vmatprep.mubr.bf16.mxu0 0
        %1431 = vmatmul.mubr.bf16.gmra.mrb[0].mxu0 %v1346
        %v1432 = vpop.f32.mrb[0].mxu0
        %v1433 = vadd.f32 %v1327, %v1432
        %v1434 = vpop.f32.mrb[0].mxu0
        %v1435 = vpop.f32.mrb[0].mxu0
        %v1436 = vadd.f32 %v1327, %v1435
        %v1437 = vpop.f32.mrb[0].mxu0
        %1438 = vmatprep.mubr.bf16.mxu0 0
        %1439 = vmatmul.mubr.bf16.gmra.mrb[0].mxu0 %v1349
        %v1440 = vpop.f32.mrb[0].mxu0
        %v1441 = vadd.f32 %v1327, %v1440
        %v1442 = vpop.f32.mrb[0].mxu0
        %v1443 = vpop.f32.mrb[0].mxu0
        %v1444 = vadd.f32 %v1327, %v1443
        %v1445 = vpop.f32.mrb[0].mxu0
        %1446 = vmatprep.mubr.bf16.mxu0 0
        %1447 = vmatmul.mubr.bf16.gmra.mrb[0].mxu0 %v1352
        %v1448 = vpop.f32.mrb[0].mxu0
        %v1449 = vadd.f32 %v1327, %v1448
        %v1450 = vpop.f32.mrb[0].mxu0
        %v1451 = vpop.f32.mrb[0].mxu0
        %v1452 = vadd.f32 %v1327, %v1451
        %v1453 = vpop.f32.mrb[0].mxu0
        %1454 = vmatprep.mubr.bf16.mxu0 0
        %1455 = vmatmul.mubr.bf16.gmra.mrb[0].mxu0 %v1355
        %v1456 = vpop.f32.mrb[0].mxu0
        %v1457 = vadd.f32 %v1327, %v1456
        %v1458 = vpop.f32.mrb[0].mxu0
        %v1459 = vpop.f32.mrb[0].mxu0
        %v1460 = vadd.f32 %v1327, %v1459
        %v1461 = vpop.f32.mrb[0].mxu0
        %1462 = vmatprep.mubr.bf16.mxu0 0
        %1463 = vmatmul.mubr.bf16.gmra.mrb[0].mxu0 %v1358
        %v1464 = vpop.f32.mrb[0].mxu0
        %v1465 = vadd.f32 %v1327, %v1464
        %v1466 = vpop.f32.mrb[0].mxu0
        %v1467 = vpop.f32.mrb[0].mxu0
        %v1468 = vadd.f32 %v1327, %v1467
        %v1469 = vpop.f32.mrb[0].mxu0
        %1470 = vmatprep.mubr.bf16.mxu0 0
        %1471 = vmatmul.mubr.bf16.gmra.mrb[0].mxu0 %v1361
        %v1472 = vpop.f32.mrb[0].mxu0
        %v1473 = vadd.f32 %v1327, %v1472
        %v1474 = vpop.f32.mrb[0].mxu0
        %v1475 = vpop.f32.mrb[0].mxu0
        %v1476 = vadd.f32 %v1327, %v1475
        %v1477 = vpop.f32.mrb[0].mxu0
        %1478 = vmatprep.mubr.bf16.mxu0 0
        %1479 = vmatmul.mubr.bf16.gmra.mrb[0].mxu0 %v1364
        %v1480 = vpop.f32.mrb[0].mxu0
        %v1481 = vadd.f32 %v1327, %v1480
        %v1482 = vpop.f32.mrb[0].mxu0
        %v1483 = vpop.f32.mrb[0].mxu0
        %v1484 = vadd.f32 %v1327, %v1483
        %v1485 = vpop.f32.mrb[0].mxu0
        %1486 = vmatprep.mubr.bf16.mxu0 0
        %1487 = vmatmul.mubr.bf16.gmra.mrb[0].mxu0 %v1367
        %v1488 = vpop.f32.mrb[0].mxu0
        %v1489 = vadd.f32 %v1327, %v1488
        %v1490 = vpop.f32.mrb[0].mxu0
        %v1491 = vpop.f32.mrb[0].mxu0
        %v1492 = vadd.f32 %v1327, %v1491
        %v1493 = vpop.f32.mrb[0].mxu0
        %1494 = vmatprep.mubr.bf16.mxu0 0
        %1495 = vmatmul.mubr.bf16.gmra.mrb[0].mxu0 %v1370
        %v1496 = vpop.f32.mrb[0].mxu0
        %v1497 = vadd.f32 %v1327, %v1496
        %v1498 = vpop.f32.mrb[0].mxu0
        %v1499 = vpop.f32.mrb[0].mxu0
        %v1500 = vadd.f32 %v1327, %v1499
        %v1501 = vpop.f32.mrb[0].mxu0
        %1502 = vmatprep.mubr.bf16.mxu0 0
        %1503 = vmatmul.mubr.bf16.gmra.mrb[0].mxu0 %v1373
        %v1504 = vpop.f32.mrb[0].mxu0
        %v1505 = vadd.f32 %v1327, %v1504
        %v1506 = vpop.f32.mrb[0].mxu0
        %v1507 = vpop.f32.mrb[0].mxu0
        %v1508 = vadd.f32 %v1327, %v1507
        %v1509 = vpop.f32.mrb[0].mxu0
        %1510 = vmatprep.mubr.bf16.mxu0 0
        %1511 = vmatmul.mubr.bf16.gmra.mrb[0].mxu0 %v1376
        %v1512 = vpop.f32.mrb[0].mxu0
        %v1513 = vadd.f32 %v1327, %v1512
        %v1514 = vpop.f32.mrb[0].mxu0
        %v1515 = vpop.f32.mrb[0].mxu0
        %v1516 = vadd.f32 %v1327, %v1515
        %v1517 = vpop.f32.mrb[0].mxu0
        %1518 = vmatprep.mubr.bf16.mxu0 0
        %1519 = vmatmul.mubr.bf16.gmra.mrb[0].mxu0 %v1379
        %v1520 = vpop.f32.mrb[0].mxu0
        %v1521 = vadd.f32 %v1327, %v1520
        %v1522 = vpop.f32.mrb[0].mxu0
        %v1523 = vpop.f32.mrb[0].mxu0
        %v1524 = vadd.f32 %v1327, %v1523
        %v1525 = vpop.f32.mrb[0].mxu0
        %1526 = vmatprep.mubr.bf16.mxu0 0
        %1527 = vmatmul.mubr.bf16.gmra.mrb[0].mxu0 %v1382
        %v1528 = vpop.f32.mrb[0].mxu0
        %v1529 = vadd.f32 %v1327, %v1528
        %v1530 = vpop.f32.mrb[0].mxu0
        %v1531 = vpop.f32.mrb[0].mxu0
        %v1532 = vadd.f32 %v1327, %v1531
        %v1533 = vpop.f32.mrb[0].mxu0
        %1534 = vmatprep.mubr.bf16.mxu0 0
        %1535 = vmatmul.mubr.bf16.gmra.mrb[0].mxu0 %v1385
        %v1536 = vpop.f32.mrb[0].mxu0
        %v1537 = vadd.f32 %v1327, %v1536
        %v1538 = vpop.f32.mrb[0].mxu0
        %v1539 = vpop.f32.mrb[0].mxu0
        %v1540 = vadd.f32 %v1327, %v1539
        %v1541 = vpop.f32.mrb[0].mxu0
        %1542 = vmatprep.mubr.bf16.mxu0 0
        %1543 = vmatmul.mubr.bf16.gmra.mrb[0].mxu0 %v1388
        %v1544 = vpop.f32.mrb[0].mxu0
        %v1545 = vadd.f32 %v1327, %v1544
        %v1546 = vpop.f32.mrb[0].mxu0
        %v1547 = vpop.f32.mrb[0].mxu0
        %v1548 = vadd.f32 %v1327, %v1547
        %v1549 = vpop.f32.mrb[0].mxu0
        %1550 = vdwg.mxu0
        %v1551 = vtanh.pop %v1425
        %v1552 = vtanh.pop %v1428
        %v1553 = vtanh.pop %v1433
        %v1554 = vtanh.pop %v1436
        %v1555 = vtanh.pop %v1441
        %v1556 = vtanh.pop %v1444
        %v1557 = vtanh.pop %v1449
        %v1558 = vtanh.pop %v1452
        %v1559 = vtanh.pop %v1457
        %v1560 = vtanh.pop %v1460
        %v1561 = vtanh.pop %v1465
        %v1562 = vtanh.pop %v1468
        %v1563 = vtanh.pop %v1473
        %v1564 = vtanh.pop %v1476
        %v1565 = vtanh.pop %v1481
        %v1566 = vtanh.pop %v1484
        %v1567 = vtanh.pop %v1489
        %v1568 = vtanh.pop %v1492
        %v1569 = vtanh.pop %v1497
        %v1570 = vtanh.pop %v1500
        %v1571 = vtanh.pop %v1505
        %v1572 = vtanh.pop %v1508
        %v1573 = vtanh.pop %v1513
        %v1574 = vtanh.pop %v1516
        %v1575 = vtanh.pop %v1521
        %v1576 = vtanh.pop %v1524
        %v1577 = vtanh.pop %v1529
        %v1578 = vtanh.pop %v1532
        %v1579 = vtanh.pop %v1537
        %v1580 = vtanh.pop %v1540
        %v1581 = vtanh.pop %v1545
        %v1582 = vtanh.pop %v1548
        %v1583 = vpack.c.bf16 %v1552, %v1551
        %v1584 = vpack.c.bf16 %v1554, %v1553
        %v1585 = vpack.c.bf16 %v1556, %v1555
        %v1586 = vpack.c.bf16 %v1558, %v1557
        %v1587 = vpack.c.bf16 %v1560, %v1559
        %v1588 = vpack.c.bf16 %v1562, %v1561
        %v1589 = vpack.c.bf16 %v1564, %v1563
        %v1590 = vpack.c.bf16 %v1566, %v1565
        %v1591 = vpack.c.bf16 %v1568, %v1567
        %v1592 = vpack.c.bf16 %v1570, %v1569
        %v1593 = vpack.c.bf16 %v1572, %v1571
        %v1594 = vpack.c.bf16 %v1574, %v1573
        %v1595 = vpack.c.bf16 %v1576, %v1575
        %v1596 = vpack.c.bf16 %v1578, %v1577
        %v1597 = vpack.c.bf16 %v1580, %v1579
        %v1598 = vpack.c.bf16 %v1582, %v1581
        %v1599 = vld [vmem:[%s6] sm:$0xf]
        %v1600 = vld [vmem:[%s6 + $0x4] sm:$0xf]
        %v1601 = vld [vmem:[%s6 + $0x8] sm:$0xf]
        %v1602 = vld [vmem:[%s6 + $0xc] sm:$0xf]
        %v1603 = vld [vmem:[%s7] sm:$0x1]
        %v1605 = vlaneseq
        %v1606 = vshrl.u32 %v1605, 7
        %v1607 = vsub.s32 0, %v1606
        %v1608 = vrot.slane %v1603, %v1607
        %v1614 = vunpack.c.l.b16 %v1599
        %v1615 = vunpack.c.l.b16 %v1600
        %v1616 = vunpack.c.l.b16 %v1601
        %v1617 = vunpack.c.l.b16 %v1602
        %v1618 = vpack.c.b16 %v1615, %v1614
        %v1619 = vpack.c.b16 %v1617, %v1616
        %v1623 = vsel %vm1341, %v1583, 0
        %v1626 = vsel %vm1341, %v1584, 0
        %v1629 = vsel %vm1341, %v1585, 0
        %v1632 = vsel %vm1341, %v1586, 0
        %v1635 = vsel %vm1341, %v1587, 0
        %v1638 = vsel %vm1341, %v1588, 0
        %v1641 = vsel %vm1341, %v1589, 0
        %v1644 = vsel %vm1341, %v1590, 0
        %v1647 = vsel %vm1341, %v1591, 0
        %v1650 = vsel %vm1341, %v1592, 0
        %v1653 = vsel %vm1341, %v1593, 0
        %v1656 = vsel %vm1341, %v1594, 0
        %v1659 = vsel %vm1341, %v1595, 0
        %v1662 = vsel %vm1341, %v1596, 0
        %v1665 = vsel %vm1341, %v1597, 0
        %v1668 = vsel %vm1341, %v1598, 0
        %1670 = vmatprep.subr.bf16.mxu0 0
        %1671 = vmatpush1.bf16.msra.mxu0 %v1618
        %1672 = vmatprep.subr.bf16.mxu0 0
        %1673 = vmatpush1.bf16.msra.mxu0 %v1619
        %1674 = vmatprep.subr.bf16.mxu0 0
        %1675 = vmatpush1.bf16.msra.mxu0 0
        %1676 = vmatprep.subr.bf16.mxu0 0
        %1677 = vmatpush1.bf16.msra.mxu0 0
        %1678 = vmatprep.subr.bf16.mxu0 0
        %1679 = vmatpush1.bf16.msra.mxu0 0
        %1680 = vmatprep.subr.bf16.mxu0 0
        %1681 = vmatpush1.bf16.msra.mxu0 0
        %1682 = vmatprep.subr.bf16.mxu0 0
        %1683 = vmatpush1.bf16.msra.mxu0 0
        %1684 = vmatprep.subr.bf16.mxu0 0
        %1685 = vmatpush1.bf16.msra.mxu0 0
        %1686 = vmatprep.subr.bf16.mxu0 0
        %1687 = vmatpush1.bf16.msra.mxu0 0
        %1688 = vmatprep.subr.bf16.mxu0 0
        %1689 = vmatpush1.bf16.msra.mxu0 0
        %1690 = vmatprep.subr.bf16.mxu0 0
        %1691 = vmatpush1.bf16.msra.mxu0 0
        %1692 = vmatprep.subr.bf16.mxu0 0
        %1693 = vmatpush1.bf16.msra.mxu0 0
        %1694 = vmatprep.subr.bf16.mxu0 0
        %1695 = vmatpush1.bf16.msra.mxu0 0
        %1696 = vmatprep.subr.bf16.mxu0 0
        %1697 = vmatpush1.bf16.msra.mxu0 0
        %1698 = vmatprep.subr.bf16.mxu0 0
        %1699 = vmatpush1.bf16.msra.mxu0 0
        %1700 = vmatprep.subr.bf16.mxu0 0
        %1701 = vmatpush1.bf16.msra.mxu0 0
        %1702 = vmatprep.mubr.bf16.mxu0 0
        %1703 = vmatmul.mubr.bf16.gmra.mrb[0].mxu0 %v1623
        %v1704 = vpop.f32.mrb[0].mxu0
        %v1705 = vadd.f32 %v1608, %v1704
        %v1706 = vpop.f32.mrb[0].mxu0
        %v1707 = vpop.f32.mrb[0].mxu0
        %v1708 = vadd.f32 %v1608, %v1707
        %v1709 = vpop.f32.mrb[0].mxu0
        %1710 = vmatprep.mubr.bf16.mxu0 0
        %1711 = vmatmul.mubr.bf16.gmra.mrb[0].mxu0 %v1626
        %v1712 = vpop.f32.mrb[0].mxu0
        %v1713 = vadd.f32 %v1608, %v1712
        %v1714 = vpop.f32.mrb[0].mxu0
        %v1715 = vpop.f32.mrb[0].mxu0
        %v1716 = vadd.f32 %v1608, %v1715
        %v1717 = vpop.f32.mrb[0].mxu0
        %1718 = vmatprep.mubr.bf16.mxu0 0
        %1719 = vmatmul.mubr.bf16.gmra.mrb[0].mxu0 %v1629
        %v1720 = vpop.f32.mrb[0].mxu0
        %v1721 = vadd.f32 %v1608, %v1720
        %v1722 = vpop.f32.mrb[0].mxu0
        %v1723 = vpop.f32.mrb[0].mxu0
        %v1724 = vadd.f32 %v1608, %v1723
        %v1725 = vpop.f32.mrb[0].mxu0
        %1726 = vmatprep.mubr.bf16.mxu0 0
        %1727 = vmatmul.mubr.bf16.gmra.mrb[0].mxu0 %v1632
        %v1728 = vpop.f32.mrb[0].mxu0
        %v1729 = vadd.f32 %v1608, %v1728
        %v1730 = vpop.f32.mrb[0].mxu0
        %v1731 = vpop.f32.mrb[0].mxu0
        %v1732 = vadd.f32 %v1608, %v1731
        %v1733 = vpop.f32.mrb[0].mxu0
        %1734 = vmatprep.mubr.bf16.mxu0 0
        %1735 = vmatmul.mubr.bf16.gmra.mrb[0].mxu0 %v1635
        %v1736 = vpop.f32.mrb[0].mxu0
        %v1737 = vadd.f32 %v1608, %v1736
        %v1738 = vpop.f32.mrb[0].mxu0
        %v1739 = vpop.f32.mrb[0].mxu0
        %v1740 = vadd.f32 %v1608, %v1739
        %v1741 = vpop.f32.mrb[0].mxu0
        %1742 = vmatprep.mubr.bf16.mxu0 0
        %1743 = vmatmul.mubr.bf16.gmra.mrb[0].mxu0 %v1638
        %v1744 = vpop.f32.mrb[0].mxu0
        %v1745 = vadd.f32 %v1608, %v1744
        %v1746 = vpop.f32.mrb[0].mxu0
        %v1747 = vpop.f32.mrb[0].mxu0
        %v1748 = vadd.f32 %v1608, %v1747
        %v1749 = vpop.f32.mrb[0].mxu0
        %1750 = vmatprep.mubr.bf16.mxu0 0
        %1751 = vmatmul.mubr.bf16.gmra.mrb[0].mxu0 %v1641
        %v1752 = vpop.f32.mrb[0].mxu0
        %v1753 = vadd.f32 %v1608, %v1752
        %v1754 = vpop.f32.mrb[0].mxu0
        %v1755 = vpop.f32.mrb[0].mxu0
        %v1756 = vadd.f32 %v1608, %v1755
        %v1757 = vpop.f32.mrb[0].mxu0
        %1758 = vmatprep.mubr.bf16.mxu0 0
        %1759 = vmatmul.mubr.bf16.gmra.mrb[0].mxu0 %v1644
        %v1760 = vpop.f32.mrb[0].mxu0
        %v1761 = vadd.f32 %v1608, %v1760
        %v1762 = vpop.f32.mrb[0].mxu0
        %v1763 = vpop.f32.mrb[0].mxu0
        %v1764 = vadd.f32 %v1608, %v1763
        %v1765 = vpop.f32.mrb[0].mxu0
        %1766 = vmatprep.mubr.bf16.mxu0 0
        %1767 = vmatmul.mubr.bf16.gmra.mrb[0].mxu0 %v1647
        %v1768 = vpop.f32.mrb[0].mxu0
        %v1769 = vadd.f32 %v1608, %v1768
        %v1770 = vpop.f32.mrb[0].mxu0
        %v1771 = vpop.f32.mrb[0].mxu0
        %v1772 = vadd.f32 %v1608, %v1771
        %v1773 = vpop.f32.mrb[0].mxu0
        %1774 = vmatprep.mubr.bf16.mxu0 0
        %1775 = vmatmul.mubr.bf16.gmra.mrb[0].mxu0 %v1650
        %v1776 = vpop.f32.mrb[0].mxu0
        %v1777 = vadd.f32 %v1608, %v1776
        %v1778 = vpop.f32.mrb[0].mxu0
        %v1779 = vpop.f32.mrb[0].mxu0
        %v1780 = vadd.f32 %v1608, %v1779
        %v1781 = vpop.f32.mrb[0].mxu0
        %1782 = vmatprep.mubr.bf16.mxu0 0
        %1783 = vmatmul.mubr.bf16.gmra.mrb[0].mxu0 %v1653
        %v1784 = vpop.f32.mrb[0].mxu0
        %v1785 = vadd.f32 %v1608, %v1784
        %v1786 = vpop.f32.mrb[0].mxu0
        %v1787 = vpop.f32.mrb[0].mxu0
        %v1788 = vadd.f32 %v1608, %v1787
        %v1789 = vpop.f32.mrb[0].mxu0
        %1790 = vmatprep.mubr.bf16.mxu0 0
        %1791 = vmatmul.mubr.bf16.gmra.mrb[0].mxu0 %v1656
        %v1792 = vpop.f32.mrb[0].mxu0
        %v1793 = vadd.f32 %v1608, %v1792
        %v1794 = vpop.f32.mrb[0].mxu0
        %v1795 = vpop.f32.mrb[0].mxu0
        %v1796 = vadd.f32 %v1608, %v1795
        %v1797 = vpop.f32.mrb[0].mxu0
        %1798 = vmatprep.mubr.bf16.mxu0 0
        %1799 = vmatmul.mubr.bf16.gmra.mrb[0].mxu0 %v1659
        %v1800 = vpop.f32.mrb[0].mxu0
        %v1801 = vadd.f32 %v1608, %v1800
        %v1802 = vpop.f32.mrb[0].mxu0
        %v1803 = vpop.f32.mrb[0].mxu0
        %v1804 = vadd.f32 %v1608, %v1803
        %v1805 = vpop.f32.mrb[0].mxu0
        %1806 = vmatprep.mubr.bf16.mxu0 0
        %1807 = vmatmul.mubr.bf16.gmra.mrb[0].mxu0 %v1662
        %v1808 = vpop.f32.mrb[0].mxu0
        %v1809 = vadd.f32 %v1608, %v1808
        %v1810 = vpop.f32.mrb[0].mxu0
        %v1811 = vpop.f32.mrb[0].mxu0
        %v1812 = vadd.f32 %v1608, %v1811
        %v1813 = vpop.f32.mrb[0].mxu0
        %1814 = vmatprep.mubr.bf16.mxu0 0
        %1815 = vmatmul.mubr.bf16.gmra.mrb[0].mxu0 %v1665
        %v1816 = vpop.f32.mrb[0].mxu0
        %v1817 = vadd.f32 %v1608, %v1816
        %v1818 = vpop.f32.mrb[0].mxu0
        %v1819 = vpop.f32.mrb[0].mxu0
        %v1820 = vadd.f32 %v1608, %v1819
        %v1821 = vpop.f32.mrb[0].mxu0
        %1822 = vmatprep.mubr.bf16.mxu0 0
        %1823 = vmatmul.mubr.bf16.gmra.mrb[0].mxu0 %v1668
        %v1824 = vpop.f32.mrb[0].mxu0
        %v1825 = vadd.f32 %v1608, %v1824
        %v1826 = vpop.f32.mrb[0].mxu0
        %v1827 = vpop.f32.mrb[0].mxu0
        %v1828 = vadd.f32 %v1608, %v1827
        %v1829 = vpop.f32.mrb[0].mxu0
        %1830 = vdwg.mxu0
        %v1831 = vtanh.pop %v1705
        %v1832 = vtanh.pop %v1708
        %v1833 = vtanh.pop %v1713
        %v1834 = vtanh.pop %v1716
        %v1835 = vtanh.pop %v1721
        %v1836 = vtanh.pop %v1724
        %v1837 = vtanh.pop %v1729
        %v1838 = vtanh.pop %v1732
        %v1839 = vtanh.pop %v1737
        %v1840 = vtanh.pop %v1740
        %v1841 = vtanh.pop %v1745
        %v1842 = vtanh.pop %v1748
        %v1843 = vtanh.pop %v1753
        %v1844 = vtanh.pop %v1756
        %v1845 = vtanh.pop %v1761
        %v1846 = vtanh.pop %v1764
        %v1847 = vtanh.pop %v1769
        %v1848 = vtanh.pop %v1772
        %v1849 = vtanh.pop %v1777
        %v1850 = vtanh.pop %v1780
        %v1851 = vtanh.pop %v1785
        %v1852 = vtanh.pop %v1788
        %v1853 = vtanh.pop %v1793
        %v1854 = vtanh.pop %v1796
        %v1855 = vtanh.pop %v1801
        %v1856 = vtanh.pop %v1804
        %v1857 = vtanh.pop %v1809
        %v1858 = vtanh.pop %v1812
        %v1859 = vtanh.pop %v1817
        %v1860 = vtanh.pop %v1820
        %v1861 = vtanh.pop %v1825
        %v1862 = vtanh.pop %v1828
        %v1863 = vld [vmem:[%s403] sm:$0x3]
        %v1864 = vlaneseq
        %v1865 = vshrl.u32 %v1864, 7
        %v1866 = vlaneseq
        %v1867 = vshrl.u32 %v1866, 7
        %v1868 = vsub.s32 0, %v1867
        %v1869 = vrot.slane %v1863, %v1868
        %v1870 = vlaneseq
        %v1871 = vshrl.u32 %v1870, 7
        %v1872 = vsub.s32 1, %v1871
        %v1873 = vrot.slane %v1863, %v1872
        %vm1874 = vcmp.eq.s32.totalorder %v1869, %v1865
        %vm1875 = vcmp.eq.s32.totalorder %v1873, %v1865
        %v1876 = vsel %vm1874, 1, 0
        %v1877 = vsel %vm1875, 1, 0
        %v1878 = vcvt.s32.f32 %v1876
        %v1879 = vcvt.s32.f32 %v1877
        %v1880 = vld [vmem:[#allocation2] sm:$0x7]
        %1881 = vmatprep.subr.mxu0 0.0
        %1882 = vmatpush1.msra.mxu0 %v1831
        %1883 = vmatprep.subr.mxu0 0.0
        %1884 = vmatpush1.msra.mxu0 %v1832
        %1885 = vmatprep.subr.mxu0 0.0
        %1886 = vmatpush1.msra.mxu0 %v1833
        %1887 = vmatprep.subr.mxu0 0.0
        %1888 = vmatpush1.msra.mxu0 %v1834
        %1889 = vmatprep.subr.mxu0 0.0
        %1890 = vmatpush1.msra.mxu0 %v1835
        %1891 = vmatprep.subr.mxu0 0.0
        %1892 = vmatpush1.msra.mxu0 %v1836
        %1893 = vmatprep.subr.mxu0 0.0
        %1894 = vmatpush1.msra.mxu0 %v1837
        %1895 = vmatprep.subr.mxu0 0.0
        %1896 = vmatpush1.msra.mxu0 %v1838
        %1897 = vmatprep.subr.mxu0 0.0
        %1898 = vmatpush1.msra.mxu0 %v1839
        %1899 = vmatprep.subr.mxu0 0.0
        %1900 = vmatpush1.msra.mxu0 %v1840
        %1901 = vmatprep.subr.mxu0 0.0
        %1902 = vmatpush1.msra.mxu0 %v1841
        %1903 = vmatprep.subr.mxu0 0.0
        %1904 = vmatpush1.msra.mxu0 %v1842
        %1905 = vmatprep.subr.mxu0 0.0
        %1906 = vmatpush1.msra.mxu0 %v1843
        %1907 = vmatprep.subr.mxu0 0.0
        %1908 = vmatpush1.msra.mxu0 %v1844
        %1909 = vmatprep.subr.mxu0 0.0
        %1910 = vmatpush1.msra.mxu0 %v1845
        %1911 = vmatprep.subr.mxu0 0.0
        %1912 = vmatpush1.msra.mxu0 %v1846
        %1913 = vmatprep.subr.mxu0 0.0
        %1914 = vmatpush1.msra.mxu0 %v1847
        %1915 = vmatprep.subr.mxu0 0.0
        %1916 = vmatpush1.msra.mxu0 %v1848
        %1917 = vmatprep.subr.mxu0 0.0
        %1918 = vmatpush1.msra.mxu0 %v1849
        %1919 = vmatprep.subr.mxu0 0.0
        %1920 = vmatpush1.msra.mxu0 %v1850
        %1921 = vmatprep.subr.mxu0 0.0
        %1922 = vmatpush1.msra.mxu0 %v1851
        %1923 = vmatprep.subr.mxu0 0.0
        %1924 = vmatpush1.msra.mxu0 %v1852
        %1925 = vmatprep.subr.mxu0 0.0
        %1926 = vmatpush1.msra.mxu0 %v1853
        %1927 = vmatprep.subr.mxu0 0.0
        %1928 = vmatpush1.msra.mxu0 %v1854
        %1929 = vmatprep.subr.mxu0 0.0
        %1930 = vmatpush1.msra.mxu0 %v1855
        %1931 = vmatprep.subr.mxu0 0.0
        %1932 = vmatpush1.msra.mxu0 %v1856
        %1933 = vmatprep.subr.mxu0 0.0
        %1934 = vmatpush1.msra.mxu0 %v1857
        %1935 = vmatprep.subr.mxu0 0.0
        %1936 = vmatpush1.msra.mxu0 %v1858
        %1937 = vmatprep.subr.mxu0 0.0
        %1938 = vmatpush1.msra.mxu0 %v1859
        %1939 = vmatprep.subr.mxu0 0.0
        %1940 = vmatpush1.msra.mxu0 %v1860
        %1941 = vmatprep.subr.mxu0 0.0
        %1942 = vmatpush1.msra.mxu0 %v1861
        %1943 = vmatprep.subr.mxu0 0.0
        %1944 = vmatpush1.msra.mxu0 %v1862
        %1945 = vmatprep.mubr.f32.mxu0 %v1879
        %1946 = vmatmul.mubr.f32.gmra.mrb[0].mxu0 %v1878
        %v1947 = vpop.f32.mrb[0].mxu0
        %v1948 = vadd.f32 0.0, %v1947
        %v1949 = vpop.f32.mrb[0].mxu0
        %1950 = vdwg.mxu0
        %v1951 = vadd.f32 %v1880, %v1948
        %vm1952 = vcmask 256000
        %1953 = vst.msk [vmem:[#allocation2] sm:$0x7] %vm1952, %v1951
        %p1954 = scmp.eq.s32.totalorder %s27, 2
        // Predicated region
        $region65: #{tpu_custom_call.1} parent=59 // pred_check
          %p1955 = pneg %p1954
        $region66: #{tpu_custom_call.1} parent=59 // pred_check_branch
          %1957 = sbr.rel (%p1955) target = $region68
        $region67: #{tpu_custom_call.1} parent=59 // pred_region
          %v1958 = vld [vmem:[#allocation2] sm:$0x7]
          %v1959 = vpack.c.bf16 %v1958, %v1958
          %v1960 = vld [vmem:[%s8] sm:$0xf]
          %v1961 = vld [vmem:[%s8 + $0x4] sm:$0xf]
          %v1962 = vld [vmem:[%s8 + $0x8] sm:$0xf]
          %v1963 = vld [vmem:[%s8 + $0xc] sm:$0xf]
          %v1964 = vld [vmem:[%s9] sm:$0x1]
          %v1966 = vlaneseq
          %v1967 = vshrl.u32 %v1966, 7
          %v1968 = vsub.s32 0, %v1967
          %v1969 = vrot.slane %v1964, %v1968
          %v1975 = vunpack.c.l.b16 %v1960
          %v1976 = vunpack.c.l.b16 %v1961
          %v1977 = vunpack.c.l.b16 %v1962
          %v1978 = vunpack.c.l.b16 %v1963
          %v1979 = vpack.c.b16 %v1976, %v1975
          %v1980 = vpack.c.b16 %v1978, %v1977
          %v1984 = vsel %vm1341, %v1959, 0
          %1986 = vmatprep.subr.bf16.mxu0 0
          %1987 = vmatpush1.bf16.msra.mxu0 %v1979
          %1988 = vmatprep.subr.bf16.mxu0 0
          %1989 = vmatpush1.bf16.msra.mxu0 %v1980
          %1990 = vmatprep.subr.bf16.mxu0 0
          %1991 = vmatpush1.bf16.msra.mxu0 0
          %1992 = vmatprep.subr.bf16.mxu0 0
          %1993 = vmatpush1.bf16.msra.mxu0 0
          %1994 = vmatprep.subr.bf16.mxu0 0
          %1995 = vmatpush1.bf16.msra.mxu0 0
          %1996 = vmatprep.subr.bf16.mxu0 0
          %1997 = vmatpush1.bf16.msra.mxu0 0
          %1998 = vmatprep.subr.bf16.mxu0 0
          %1999 = vmatpush1.bf16.msra.mxu0 0
          %2000 = vmatprep.subr.bf16.mxu0 0
          %2001 = vmatpush1.bf16.msra.mxu0 0
          %2002 = vmatprep.subr.bf16.mxu0 0
          %2003 = vmatpush1.bf16.msra.mxu0 0
          %2004 = vmatprep.subr.bf16.mxu0 0
          %2005 = vmatpush1.bf16.msra.mxu0 0
          %2006 = vmatprep.subr.bf16.mxu0 0
          %2007 = vmatpush1.bf16.msra.mxu0 0
          %2008 = vmatprep.subr.bf16.mxu0 0
          %2009 = vmatpush1.bf16.msra.mxu0 0
          %2010 = vmatprep.subr.bf16.mxu0 0
          %2011 = vmatpush1.bf16.msra.mxu0 0
          %2012 = vmatprep.subr.bf16.mxu0 0
          %2013 = vmatpush1.bf16.msra.mxu0 0
          %2014 = vmatprep.subr.bf16.mxu0 0
          %2015 = vmatpush1.bf16.msra.mxu0 0
          %2016 = vmatprep.subr.bf16.mxu0 0
          %2017 = vmatpush1.bf16.msra.mxu0 0
          %2018 = vmatprep.mubr.bf16.mxu0 0
          %2019 = vmatmul.mubr.bf16.gmra.mrb[0].mxu0 %v1984
          %v2020 = vpop.f32.mrb[0].mxu0
          %v2021 = vadd.f32 %v1969, %v2020
          %v2022 = vpop.f32.mrb[0].mxu0
          %v2023 = vpop.f32.mrb[0].mxu0
          %v2024 = vpop.f32.mrb[0].mxu0
          %2025 = vdwg.mxu0
          %v2026 = vtanh.pop %v2021
          %vm2027 = vcmask 75776
          %2028 = vst.msk [vmem:[#allocation3] sm:$0x7] %vm2027, %v2026
        $region68: #{tpu_custom_call.1} parent=59 // pred_fallthru
          _
        // Predicated region
        $region69: #{tpu_custom_call.1} parent=59 // pred_check
          %p2029 = pneg %p275
        $region70: #{tpu_custom_call.1} parent=59 // pred_check_branch
          %2031 = sbr.rel (%p2029) target = $region72
        $region71: #{tpu_custom_call.1} parent=59 // pred_region
          %s2033 = ssub.s32 64, 64
          %2034 = vsyncadd [#allocation4], %s2033
          %s2036 = sshll.u32 [#allocation3], 4
          %s2037 = int_to_ptr.vmem [resolvable:$true] %s2036
          %2039 = dma.vmem_to_hbm [thread:$0]  %s2037, 64, %s10, [#allocation4]
        $region72: #{tpu_custom_call.1} parent=59 // pred_fallthru
          _
        // Predicated region
        $region73: #{tpu_custom_call.1} parent=59 // pred_check
          %p2040 = pneg %p275
        $region74: #{tpu_custom_call.1} parent=59 // pred_check_branch
          %2042 = sbr.rel (%p2040) target = $region76
        $region75: #{tpu_custom_call.1} parent=59 // pred_region
          %2043 = dma.done [#allocation4], 64
        $region76: #{tpu_custom_call.1} parent=59 // pred_fallthru
          _
      $region60: #{tpu_custom_call.1} parent=5 // pred_fallthru
        _
      %p2044 = scmp.le.s32.totalorder 2, %s17
      // Predicated region
      $region77: #{tpu_custom_call.1} parent=5 // pred_check
        %p2045 = pneg %p2044
      $region78: #{tpu_custom_call.1} parent=5 // pred_check_branch
        %2047 = sbr.rel (%p2045) target = $region80
      $region79: #{tpu_custom_call.1} parent=5 // pred_region
        %s2048 = ssub.s32 %s17, 2
      $region80: #{tpu_custom_call.1} parent=5 // pred_fallthru
        _
    $region6: #{tpu_custom_call.1} parent=1 // loop_footer
      %s21 = sadd.s32 1, %s17
    $region7: #{tpu_custom_call.1} parent=1 // loop_footer_branch
      %16 = sbr.rel target = $region3
    $region8: #{tpu_custom_call.1} parent=1 // loop_exit
      _
    %2049 = vsyncpa [#allocation4], 1
    %s2050 = scalar_lea.sflag [#allocation4], 1
    %2051 = vsyncpa %s2050, 1

</llo_original>
